<compile_context>
chip_gen: v7x
topology: tpu7x:2x2x1
jax: 0.10.0
libtpu: 0.0.40
codegen_flags: <defaults>
</compile_context>

<pallas_src>
import functools

import jax
import jax.numpy as jnp
from jax.experimental import pallas as pl
from jax.experimental.pallas import tpu as pltpu


def _round_up(x, m):
    return (x + m - 1) // m * m


# ---------------------------------------------------------------------------
# Pallas kernel: fused encoder -> decoder -> classifier heads per row tile.
# ---------------------------------------------------------------------------
def _fused_segmentor_kernel(x_ref, we_ref, be_ref, wd_ref, bd_ref,
                            wh_ref, bh_ref, o_ref):
    # x_ref : (tm, Cin)
    # we_ref: (Cin, E)   be_ref: (1, E)     -- concat of selected encoder convs
    # wd_ref: (E, D)     bd_ref: (1, D)     -- decoder 1x1 conv
    # wh_ref: (D, Cpad)  bh_ref: (1, Cpad)  -- concat of classifier heads (lane-padded)
    # o_ref : (tm, Cpad)
    x = x_ref[...]
    enc = jnp.dot(x, we_ref[...], preferred_element_type=jnp.float32) + be_ref[...]
    dec = jnp.dot(enc, wd_ref[...], preferred_element_type=jnp.float32) + bd_ref[...]
    out = jnp.dot(dec, wh_ref[...], preferred_element_type=jnp.float32) + bh_ref[...]
    o_ref[...] = out.astype(o_ref.dtype)


def fused_segmentor_pallas(x_flat, we, be, wd, bd, wh, bh, *, tm_target=512):
    """x_flat: (M, Cin) f32. Returns (M, Cout_pad) where Cout_pad = wh.shape[1]."""
    M, Cin = x_flat.shape
    E = we.shape[1]
    D = wd.shape[1]
    Cout_pad = wh.shape[1]

    # Row tile: as large as reasonable, multiple of 8 (sublane), pad M up to it.
    tm = min(tm_target, _round_up(M, 8))
    M_pad = _round_up(M, tm)
    if M_pad != M:
        x_flat = jnp.pad(x_flat, ((0, M_pad - M), (0, 0)))

    out = pl.pallas_call(
        _fused_segmentor_kernel,
        out_shape=jax.ShapeDtypeStruct((M_pad, Cout_pad), x_flat.dtype),
        grid_spec=pltpu.PrefetchScalarGridSpec(
            num_scalar_prefetch=0,
            grid=(M_pad // tm,),
            in_specs=[
                pl.BlockSpec((tm, Cin), lambda i: (i, 0)),
                pl.BlockSpec((Cin, E), lambda i: (0, 0)),
                pl.BlockSpec((1, E), lambda i: (0, 0)),
                pl.BlockSpec((E, D), lambda i: (0, 0)),
                pl.BlockSpec((1, D), lambda i: (0, 0)),
                pl.BlockSpec((D, Cout_pad), lambda i: (0, 0)),
                pl.BlockSpec((1, Cout_pad), lambda i: (0, 0)),
            ],
            out_specs=pl.BlockSpec((tm, Cout_pad), lambda i: (i, 0)),
        ),
        compiler_params=pltpu.CompilerParams(
            dimension_semantics=("parallel",)),
    )(x_flat, we, be, wd, bd, wh, bh)
    return out[:M]


# ---------------------------------------------------------------------------
# BaseSegmentor in JAX, hot path in a single Pallas kernel.
# ---------------------------------------------------------------------------
def _nchw_to_flat(x_nchw):
    # (B, C, H, W) -> (B*H*W, C)
    B, C, H, W = x_nchw.shape
    return jnp.transpose(x_nchw, (0, 2, 3, 1)).reshape(B * H * W, C), (B, H, W)


def _flat_to_nchw(x_flat, bhw):
    B, H, W = bhw
    C = x_flat.shape[1]
    return jnp.transpose(x_flat.reshape(B, H, W, C), (0, 3, 1, 2))


def init_params(key, in_channels, enc_channels, num_stages,
                decoder_out_channels, num_known_classes_list):
    params = {}
    keys = jax.random.split(key, 2 * num_stages + 2 + 2 * len(num_known_classes_list))
    ki = 0
    # encoder: num_stages 1x1 convs, each in_channels -> enc_channels
    enc = []
    for _ in range(num_stages):
        w = jax.random.normal(keys[ki], (in_channels, enc_channels), jnp.float32) * 0.1
        b = jax.random.normal(keys[ki + 1], (enc_channels,), jnp.float32) * 0.01
        enc.append((w, b))
        ki += 2
    params["encoder"] = enc
    # decoder: 1x1 conv (num_stages*enc_channels) -> decoder_out_channels
    w = jax.random.normal(keys[ki], (num_stages * enc_channels, decoder_out_channels),
                          jnp.float32) * 0.1
    b = jax.random.normal(keys[ki + 1], (decoder_out_channels,), jnp.float32) * 0.01
    params["decoder"] = (w, b)
    ki += 2
    # convs_cls: one 1x1 conv per task
    heads = []
    for nc in num_known_classes_list:
        w = jax.random.normal(keys[ki], (decoder_out_channels, nc), jnp.float32) * 0.1
        b = jax.random.normal(keys[ki + 1], (nc,), jnp.float32) * 0.01
        heads.append((w, b))
        ki += 2
    params["convs_cls"] = heads
    return params


def transforminputs(inputs, selected_indices):
    # Kept for API fidelity with the PyTorch module (used by the reference).
    if isinstance(selected_indices, int):
        selected_indices = [selected_indices]
    outputs = [inputs[idx] for idx in selected_indices]
    return outputs if len(selected_indices) > 1 else outputs[0]


@functools.partial(jax.jit, static_argnames=("selected_indices",))
def base_segmentor_forward(params, x_nchw, selected_indices=(0, 1, 2, 3)):
    if isinstance(selected_indices, int):
        selected_indices = (selected_indices,)
    x_flat, bhw = _nchw_to_flat(x_nchw)

    # Encoder: fuse the selected stages into one (Cin, n_sel*E) weight.
    # Computing x @ W_enc directly produces the channel-concat of the selected
    # encoder features -- transforminputs + jnp.concatenate disappear.
    we = jnp.concatenate([params["encoder"][i][0] for i in selected_indices], axis=1)
    be = jnp.concatenate([params["encoder"][i][1] for i in selected_indices],
                         axis=0).reshape(1, -1)

    # Decoder 1x1 conv.
    wd, bd = params["decoder"]
    bd = bd.reshape(1, -1)

    # Classifier heads: [conv(dec) for conv in convs_cls]; cat(dim=1)
    # == one matmul against the channel-concatenated weights/biases.
    wh = jnp.concatenate([w for (w, _) in params["convs_cls"]], axis=1)
    bh = jnp.concatenate([b for (_, b) in params["convs_cls"]], axis=0)
    sum_nc = wh.shape[1]

    # Pad the final output channels to a multiple of 128 lanes so the kernel's
    # store stream is unmasked / lane-dense; slice the real channels back out.
    cout_pad = _round_up(max(sum_nc, 1), 128)
    if cout_pad != sum_nc:
        wh = jnp.pad(wh, ((0, 0), (0, cout_pad - sum_nc)))
        bh = jnp.pad(bh, ((0, cout_pad - sum_nc),))
    bh = bh.reshape(1, -1)

    seg_logits_flat = fused_segmentor_pallas(x_flat, we, be, wd, bd, wh, bh)
    seg_logits_flat = seg_logits_flat[:, :sum_nc]

    seg_logits = _flat_to_nchw(seg_logits_flat, bhw)  # NCHW, like PyTorch
    return {"seg_logits": seg_logits}


if __name__ == "__main__":
    key = jax.random.PRNGKey(0)
    k_param, k_x = jax.random.split(key)

    # Small shapes consistent with the module.
    B, C, H, W = 2, 4, 16, 16
    enc_channels = 8
    num_stages = 4
    decoder_out_channels = 16
    num_known_classes_list = [3, 5]
    selected_indices = (0, 1, 2, 3)

    params = init_params(k_param, C, enc_channels, num_stages,
                         decoder_out_channels, num_known_classes_list)
    x = jax.random.normal(k_x, (B, C, H, W), jnp.float32)

    outputs = base_segmentor_forward(params, x, selected_indices=selected_indices)
    seg_logits = jax.block_until_ready(outputs["seg_logits"])

    expected_c = sum(num_known_classes_list)
    assert seg_logits.shape == (B, expected_c, H, W), seg_logits.shape
    assert jnp.all(jnp.isfinite(seg_logits))

    # Reference check against plain JAX (same semantics as PyTorch 1x1 convs).
    def ref_forward(params, x_nchw):
        xf, bhw = _nchw_to_flat(x_nchw)
        feats = [xf @ w + b for (w, b) in params["encoder"]]
        sel = transforminputs(feats, list(selected_indices))
        if not isinstance(sel, (list, tuple)):
            sel = [sel]
        fused = jnp.concatenate(sel, axis=1)
        dw, db = params["decoder"]
        dec = fused @ dw + db
        heads = [dec @ w + b for (w, b) in params["convs_cls"]]
        return _flat_to_nchw(jnp.concatenate(heads, axis=1), bhw)

    ref = ref_forward(params, x)
    assert jnp.allclose(seg_logits, ref, atol=1e-4, rtol=1e-4)

    print("KERNEL_OK")
</pallas_src>

<mosaic_0001>
module attributes {stable_mosaic.version = 11 : i64} {
  func.func @_fused_segmentor_kernel(%arg0: i32, %arg1: memref<512x4xf32, #tpu.memory_space<vmem>>, %arg2: memref<4x32xf32, #tpu.memory_space<vmem>>, %arg3: memref<1x32xf32, #tpu.memory_space<vmem>>, %arg4: memref<32x16xf32, #tpu.memory_space<vmem>>, %arg5: memref<1x16xf32, #tpu.memory_space<vmem>>, %arg6: memref<16x128xf32, #tpu.memory_space<vmem>>, %arg7: memref<1x128xf32, #tpu.memory_space<vmem>>, %arg8: memref<512x128xf32, #tpu.memory_space<vmem>>) attributes {dimension_semantics = [#tpu.dimension_semantics<parallel>], iteration_bounds = array<i64: 1>, scalar_prefetch = 0 : i64, scratch_operands = 0 : i64, tpu.core_type = #tpu.core_type<tc>, window_params = [{transform_indices = @transform_0, window_bounds = array<i64: 512, 4>}, {pipeline_mode = #tpu.pipeline_mode<synchronous>, transform_indices = @transform_1, window_bounds = array<i64: 4, 32>}, {pipeline_mode = #tpu.pipeline_mode<synchronous>, transform_indices = @transform_2, window_bounds = array<i64: 1, 32>}, {pipeline_mode = #tpu.pipeline_mode<synchronous>, transform_indices = @transform_3, window_bounds = array<i64: 32, 16>}, {pipeline_mode = #tpu.pipeline_mode<synchronous>, transform_indices = @transform_4, window_bounds = array<i64: 1, 16>}, {pipeline_mode = #tpu.pipeline_mode<synchronous>, transform_indices = @transform_5, window_bounds = array<i64: 16, 128>}, {pipeline_mode = #tpu.pipeline_mode<synchronous>, transform_indices = @transform_6, window_bounds = array<i64: 1, 128>}, {transform_indices = @transform_7, window_bounds = array<i64: 512, 128>}]} {
    %c0 = arith.constant 0 : index
    %c0_0 = arith.constant 0 : index
    %0 = vector.load %arg1[%c0, %c0_0] : memref<512x4xf32, #tpu.memory_space<vmem>>, vector<512x4xf32>
    %c0_1 = arith.constant 0 : index
    %c0_2 = arith.constant 0 : index
    %1 = vector.load %arg2[%c0_1, %c0_2] : memref<4x32xf32, #tpu.memory_space<vmem>>, vector<4x32xf32>
    %cst = arith.constant dense<0.000000e+00> : vector<512x32xf32>
    %2 = tpu.matmul %0, %1, %cst {dimension_numbers = #tpu.dot_dimension_numbers<[1], [0], [0], [1], [0, 0, 1, 1], [], []>} : vector<512x4xf32>, vector<4x32xf32>, vector<512x32xf32> -> vector<512x32xf32>
    %c0_3 = arith.constant 0 : index
    %c0_4 = arith.constant 0 : index
    %3 = vector.load %arg3[%c0_3, %c0_4] : memref<1x32xf32, #tpu.memory_space<vmem>>, vector<1x32xf32>
    %4 = vector.broadcast %3 : vector<1x32xf32> to vector<512x32xf32>
    %5 = arith.addf %2, %4 : vector<512x32xf32>
    %c0_5 = arith.constant 0 : index
    %c0_6 = arith.constant 0 : index
    %6 = vector.load %arg4[%c0_5, %c0_6] : memref<32x16xf32, #tpu.memory_space<vmem>>, vector<32x16xf32>
    %cst_7 = arith.constant dense<0.000000e+00> : vector<512x16xf32>
    %7 = tpu.matmul %5, %6, %cst_7 {dimension_numbers = #tpu.dot_dimension_numbers<[1], [0], [0], [1], [0, 0, 1, 1], [], []>} : vector<512x32xf32>, vector<32x16xf32>, vector<512x16xf32> -> vector<512x16xf32>
    %c0_8 = arith.constant 0 : index
    %c0_9 = arith.constant 0 : index
    %8 = vector.load %arg5[%c0_8, %c0_9] : memref<1x16xf32, #tpu.memory_space<vmem>>, vector<1x16xf32>
    %9 = vector.broadcast %8 : vector<1x16xf32> to vector<512x16xf32>
    %10 = arith.addf %7, %9 : vector<512x16xf32>
    %c0_10 = arith.constant 0 : index
    %c0_11 = arith.constant 0 : index
    %11 = vector.load %arg6[%c0_10, %c0_11] : memref<16x128xf32, #tpu.memory_space<vmem>>, vector<16x128xf32>
    %cst_12 = arith.constant dense<0.000000e+00> : vector<512x128xf32>
    %12 = tpu.matmul %10, %11, %cst_12 {dimension_numbers = #tpu.dot_dimension_numbers<[1], [0], [0], [1], [0, 0, 1, 1], [], []>} : vector<512x16xf32>, vector<16x128xf32>, vector<512x128xf32> -> vector<512x128xf32>
    %c0_13 = arith.constant 0 : index
    %c0_14 = arith.constant 0 : index
    %13 = vector.load %arg7[%c0_13, %c0_14] : memref<1x128xf32, #tpu.memory_space<vmem>>, vector<1x128xf32>
    %14 = vector.broadcast %13 : vector<1x128xf32> to vector<512x128xf32>
    %15 = arith.addf %12, %14 : vector<512x128xf32>
    %c0_15 = arith.constant 0 : index
    %c0_16 = arith.constant 0 : index
    %16 = vector.load %arg8[%c0_15, %c0_16] : memref<512x128xf32, #tpu.memory_space<vmem>>, vector<512x128xf32>
    tpu.vector_store %arg8[%c0_15, %c0_16], %15 {strides = array<i32>} : memref<512x128xf32, #tpu.memory_space<vmem>>, vector<512x128xf32>,
    return
  }
  func.func @transform_0(%arg0: i32) -> (i32, i32) {
    %c0_i32 = arith.constant 0 : i32
    %c0_i32_0 = arith.constant 0 : i32
    return %arg0, %c0_i32 : i32, i32
  }
  func.func @transform_1(%arg0: i32) -> (i32, i32) {
    %c0_i32 = arith.constant 0 : i32
    %c0_i32_0 = arith.constant 0 : i32
    %c0_i32_1 = arith.constant 0 : i32
    return %c0_i32, %c0_i32_0 : i32, i32
  }
  func.func @transform_2(%arg0: i32) -> (i32, i32) {
    %c0_i32 = arith.constant 0 : i32
    %c0_i32_0 = arith.constant 0 : i32
    %c0_i32_1 = arith.constant 0 : i32
    return %c0_i32, %c0_i32_0 : i32, i32
  }
  func.func @transform_3(%arg0: i32) -> (i32, i32) {
    %c0_i32 = arith.constant 0 : i32
    %c0_i32_0 = arith.constant 0 : i32
    %c0_i32_1 = arith.constant 0 : i32
    return %c0_i32, %c0_i32_0 : i32, i32
  }
  func.func @transform_4(%arg0: i32) -> (i32, i32) {
    %c0_i32 = arith.constant 0 : i32
    %c0_i32_0 = arith.constant 0 : i32
    %c0_i32_1 = arith.constant 0 : i32
    return %c0_i32, %c0_i32_0 : i32, i32
  }
  func.func @transform_5(%arg0: i32) -> (i32, i32) {
    %c0_i32 = arith.constant 0 : i32
    %c0_i32_0 = arith.constant 0 : i32
    %c0_i32_1 = arith.constant 0 : i32
    return %c0_i32, %c0_i32_0 : i32, i32
  }
  func.func @transform_6(%arg0: i32) -> (i32, i32) {
    %c0_i32 = arith.constant 0 : i32
    %c0_i32_0 = arith.constant 0 : i32
    %c0_i32_1 = arith.constant 0 : i32
    return %c0_i32, %c0_i32_0 : i32, i32
  }
  func.func @transform_7(%arg0: i32) -> (i32, i32) {
    %c0_i32 = arith.constant 0 : i32
    %c0_i32_0 = arith.constant 0 : i32
    return %arg0, %c0_i32 : i32, i32
  }
}

</mosaic_0001>

<llo_original>
// kernel: base_segmentor_forward.1
$region0: #{base_segmentor_forward.1}
  #allocation0 [shape = 'u32[]', space=smem, size = 0x4, offset = 0x4, fixed_abs, tag = 'smem constant byte address 0x4 - core index']
  #allocation1 [shape = 'u32[144,128]{1,0:T(1,128)}', space=vmem, size = 0x12000, scoped, tag = 'internal scratch']
  %s0 = inlined_call_operand.vmem [shape: f32[512,4], index: 0, kind: input, shape index: {}]
  %s1 = inlined_call_operand.vmem [shape: f32[4,32], index: 1, kind: input, shape index: {}]
  %s2 = inlined_call_operand.vmem [shape: f32[1,32], index: 2, kind: input, shape index: {}]
  %s3 = inlined_call_operand.vmem [shape: f32[32,16], index: 3, kind: input, shape index: {}]
  %s4 = inlined_call_operand.vmem [shape: f32[1,16], index: 4, kind: input, shape index: {}]
  %s5 = inlined_call_operand.vmem [shape: f32[16,128], index: 5, kind: input, shape index: {}]
  %s6 = inlined_call_operand.vmem [shape: f32[1,128], index: 6, kind: input, shape index: {}]
  %s7 = inlined_call_operand.vmem [shape: f32[512,128], index: 7, kind: output, shape index: {}]
  %s8 = sld [smem:[#allocation0]]
  $region38: #{base_segmentor_forward.1} parent=0
    _
  %s10 = ssub.s32 1, %s8
  %s11 = scalar_select 0, %s10, %s8
  // Predicated region
  $region2: #{base_segmentor_forward.1} parent=0 // pred_check
    _
  $region3: #{base_segmentor_forward.1} parent=0 // pred_check_branch
    %13 = sbr.rel (0) target = $region5
  $region4: #{base_segmentor_forward.1} parent=0 // pred_region
    _
  $region5: #{base_segmentor_forward.1} parent=0 // pred_fallthru
    _
  // Predicated region
  $region6: #{base_segmentor_forward.1} parent=0 // pred_check
    _
  $region7: #{base_segmentor_forward.1} parent=0 // pred_check_branch
    %15 = sbr.rel (0) target = $region9
  $region8: #{base_segmentor_forward.1} parent=0 // pred_region
    _
  $region9: #{base_segmentor_forward.1} parent=0 // pred_fallthru
    _
  // Predicated region
  $region10: #{base_segmentor_forward.1} parent=0 // pred_check
    _
  $region11: #{base_segmentor_forward.1} parent=0 // pred_check_branch
    %17 = sbr.rel (0) target = $region13
  $region12: #{base_segmentor_forward.1} parent=0 // pred_region
    _
  $region13: #{base_segmentor_forward.1} parent=0 // pred_fallthru
    _
  // Predicated region
  $region14: #{base_segmentor_forward.1} parent=0 // pred_check
    _
  $region15: #{base_segmentor_forward.1} parent=0 // pred_check_branch
    %19 = sbr.rel (0) target = $region17
  $region16: #{base_segmentor_forward.1} parent=0 // pred_region
    _
  $region17: #{base_segmentor_forward.1} parent=0 // pred_fallthru
    _
  // Predicated region
  $region18: #{base_segmentor_forward.1} parent=0 // pred_check
    _
  $region19: #{base_segmentor_forward.1} parent=0 // pred_check_branch
    %21 = sbr.rel (0) target = $region21
  $region20: #{base_segmentor_forward.1} parent=0 // pred_region
    _
  $region21: #{base_segmentor_forward.1} parent=0 // pred_fallthru
    _
  // Predicated region
  $region22: #{base_segmentor_forward.1} parent=0 // pred_check
    _
  $region23: #{base_segmentor_forward.1} parent=0 // pred_check_branch
    %23 = sbr.rel (0) target = $region25
  $region24: #{base_segmentor_forward.1} parent=0 // pred_region
    _
  $region25: #{base_segmentor_forward.1} parent=0 // pred_fallthru
    _
  // Predicated region
  $region26: #{base_segmentor_forward.1} parent=0 // pred_check
    _
  $region27: #{base_segmentor_forward.1} parent=0 // pred_check_branch
    %25 = sbr.rel (0) target = $region29
  $region28: #{base_segmentor_forward.1} parent=0 // pred_region
    _
  $region29: #{base_segmentor_forward.1} parent=0 // pred_fallthru
    _
  %v26 = vld [vmem:[%s0] sm:$0xff]
  %v27 = vld [vmem:[%s0 + $0x8] sm:$0xff]
  %v28 = vld [vmem:[%s0 + $0x10] sm:$0xff]
  %v29 = vld [vmem:[%s0 + $0x18] sm:$0xff]
  %v30 = vld [vmem:[%s0 + $0x20] sm:$0xff]
  %v31 = vld [vmem:[%s0 + $0x28] sm:$0xff]
  %v32 = vld [vmem:[%s0 + $0x30] sm:$0xff]
  %v33 = vld [vmem:[%s0 + $0x38] sm:$0xff]
  %v34 = vld [vmem:[%s0 + $0x40] sm:$0xff]
  %v35 = vld [vmem:[%s0 + $0x48] sm:$0xff]
  %v36 = vld [vmem:[%s0 + $0x50] sm:$0xff]
  %v37 = vld [vmem:[%s0 + $0x58] sm:$0xff]
  %v38 = vld [vmem:[%s0 + $0x60] sm:$0xff]
  %v39 = vld [vmem:[%s0 + $0x68] sm:$0xff]
  %v40 = vld [vmem:[%s0 + $0x70] sm:$0xff]
  %v41 = vld [vmem:[%s0 + $0x78] sm:$0xff]
  %v42 = vld [vmem:[%s0 + $0x80] sm:$0xff]
  %v43 = vld [vmem:[%s0 + $0x88] sm:$0xff]
  %v44 = vld [vmem:[%s0 + $0x90] sm:$0xff]
  %v45 = vld [vmem:[%s0 + $0x98] sm:$0xff]
  %v46 = vld [vmem:[%s0 + $0xa0] sm:$0xff]
  %v47 = vld [vmem:[%s0 + $0xa8] sm:$0xff]
  %v48 = vld [vmem:[%s0 + $0xb0] sm:$0xff]
  %v49 = vld [vmem:[%s0 + $0xb8] sm:$0xff]
  %v50 = vld [vmem:[%s0 + $0xc0] sm:$0xff]
  %v51 = vld [vmem:[%s0 + $0xc8] sm:$0xff]
  %v52 = vld [vmem:[%s0 + $0xd0] sm:$0xff]
  %v53 = vld [vmem:[%s0 + $0xd8] sm:$0xff]
  %v54 = vld [vmem:[%s0 + $0xe0] sm:$0xff]
  %v55 = vld [vmem:[%s0 + $0xe8] sm:$0xff]
  %v56 = vld [vmem:[%s0 + $0xf0] sm:$0xff]
  %v57 = vld [vmem:[%s0 + $0xf8] sm:$0xff]
  %v58 = vld [vmem:[%s0 + $0x100] sm:$0xff]
  %v59 = vld [vmem:[%s0 + $0x108] sm:$0xff]
  %v60 = vld [vmem:[%s0 + $0x110] sm:$0xff]
  %v61 = vld [vmem:[%s0 + $0x118] sm:$0xff]
  %v62 = vld [vmem:[%s0 + $0x120] sm:$0xff]
  %v63 = vld [vmem:[%s0 + $0x128] sm:$0xff]
  %v64 = vld [vmem:[%s0 + $0x130] sm:$0xff]
  %v65 = vld [vmem:[%s0 + $0x138] sm:$0xff]
  %v66 = vld [vmem:[%s0 + $0x140] sm:$0xff]
  %v67 = vld [vmem:[%s0 + $0x148] sm:$0xff]
  %v68 = vld [vmem:[%s0 + $0x150] sm:$0xff]
  %v69 = vld [vmem:[%s0 + $0x158] sm:$0xff]
  %v70 = vld [vmem:[%s0 + $0x160] sm:$0xff]
  %v71 = vld [vmem:[%s0 + $0x168] sm:$0xff]
  %v72 = vld [vmem:[%s0 + $0x170] sm:$0xff]
  %v73 = vld [vmem:[%s0 + $0x178] sm:$0xff]
  %v74 = vld [vmem:[%s0 + $0x180] sm:$0xff]
  %v75 = vld [vmem:[%s0 + $0x188] sm:$0xff]
  %v76 = vld [vmem:[%s0 + $0x190] sm:$0xff]
  %v77 = vld [vmem:[%s0 + $0x198] sm:$0xff]
  %v78 = vld [vmem:[%s0 + $0x1a0] sm:$0xff]
  %v79 = vld [vmem:[%s0 + $0x1a8] sm:$0xff]
  %v80 = vld [vmem:[%s0 + $0x1b0] sm:$0xff]
  %v81 = vld [vmem:[%s0 + $0x1b8] sm:$0xff]
  %v82 = vld [vmem:[%s0 + $0x1c0] sm:$0xff]
  %v83 = vld [vmem:[%s0 + $0x1c8] sm:$0xff]
  %v84 = vld [vmem:[%s0 + $0x1d0] sm:$0xff]
  %v85 = vld [vmem:[%s0 + $0x1d8] sm:$0xff]
  %v86 = vld [vmem:[%s0 + $0x1e0] sm:$0xff]
  %v87 = vld [vmem:[%s0 + $0x1e8] sm:$0xff]
  %v88 = vld [vmem:[%s0 + $0x1f0] sm:$0xff]
  %v89 = vld [vmem:[%s0 + $0x1f8] sm:$0xff]
  %v90 = vld [vmem:[%s1] sm:$0xf]
  %v91 = vld [vmem:[%s2] sm:$0x1]
  %v93 = vlaneseq
  %v94 = vshrl.u32 %v93, 7
  %v95 = vsub.s32 0, %v94
  %v96 = vrot.slane %v91, %v95
  %vm98 = vcmask 31744
  %v100 = vsel %vm98, %v26, 0
  %v103 = vsel %vm98, %v27, 0
  %v106 = vsel %vm98, %v28, 0
  %v109 = vsel %vm98, %v29, 0
  %v112 = vsel %vm98, %v30, 0
  %v115 = vsel %vm98, %v31, 0
  %v118 = vsel %vm98, %v32, 0
  %v121 = vsel %vm98, %v33, 0
  %v124 = vsel %vm98, %v34, 0
  %v127 = vsel %vm98, %v35, 0
  %v130 = vsel %vm98, %v36, 0
  %v133 = vsel %vm98, %v37, 0
  %v136 = vsel %vm98, %v38, 0
  %v139 = vsel %vm98, %v39, 0
  %v142 = vsel %vm98, %v40, 0
  %v145 = vsel %vm98, %v41, 0
  %v148 = vsel %vm98, %v42, 0
  %v151 = vsel %vm98, %v43, 0
  %v154 = vsel %vm98, %v44, 0
  %v157 = vsel %vm98, %v45, 0
  %v160 = vsel %vm98, %v46, 0
  %v163 = vsel %vm98, %v47, 0
  %v166 = vsel %vm98, %v48, 0
  %v169 = vsel %vm98, %v49, 0
  %v172 = vsel %vm98, %v50, 0
  %v175 = vsel %vm98, %v51, 0
  %v178 = vsel %vm98, %v52, 0
  %v181 = vsel %vm98, %v53, 0
  %v184 = vsel %vm98, %v54, 0
  %v187 = vsel %vm98, %v55, 0
  %v190 = vsel %vm98, %v56, 0
  %v193 = vsel %vm98, %v57, 0
  %v196 = vsel %vm98, %v58, 0
  %v199 = vsel %vm98, %v59, 0
  %v202 = vsel %vm98, %v60, 0
  %v205 = vsel %vm98, %v61, 0
  %v208 = vsel %vm98, %v62, 0
  %v211 = vsel %vm98, %v63, 0
  %v214 = vsel %vm98, %v64, 0
  %v217 = vsel %vm98, %v65, 0
  %v220 = vsel %vm98, %v66, 0
  %v223 = vsel %vm98, %v67, 0
  %v226 = vsel %vm98, %v68, 0
  %v229 = vsel %vm98, %v69, 0
  %v232 = vsel %vm98, %v70, 0
  %v235 = vsel %vm98, %v71, 0
  %v238 = vsel %vm98, %v72, 0
  %v241 = vsel %vm98, %v73, 0
  %v244 = vsel %vm98, %v74, 0
  %v247 = vsel %vm98, %v75, 0
  %v250 = vsel %vm98, %v76, 0
  %v253 = vsel %vm98, %v77, 0
  %v256 = vsel %vm98, %v78, 0
  %v259 = vsel %vm98, %v79, 0
  %v262 = vsel %vm98, %v80, 0
  %v265 = vsel %vm98, %v81, 0
  %v268 = vsel %vm98, %v82, 0
  %v271 = vsel %vm98, %v83, 0
  %v274 = vsel %vm98, %v84, 0
  %v277 = vsel %vm98, %v85, 0
  %v280 = vsel %vm98, %v86, 0
  %v283 = vsel %vm98, %v87, 0
  %v286 = vsel %vm98, %v88, 0
  %v289 = vsel %vm98, %v89, 0
  %vm291 = vcmask 1043456
  %v293 = vsel %vm291, %v90, 0
  %295 = vmatprep.subr.mxu0 0.0
  %296 = vmatpush1.msra.mxu0 %v293
  %297 = vmatprep.subr.mxu0 0.0
  %298 = vmatpush1.msra.mxu0 0.0
  %299 = vmatprep.subr.mxu0 0.0
  %300 = vmatpush1.msra.mxu0 0.0
  %301 = vmatprep.subr.mxu0 0.0
  %302 = vmatpush1.msra.mxu0 0.0
  %303 = vmatprep.subr.mxu0 0.0
  %304 = vmatpush1.msra.mxu0 0.0
  %305 = vmatprep.subr.mxu0 0.0
  %306 = vmatpush1.msra.mxu0 0.0
  %307 = vmatprep.subr.mxu0 0.0
  %308 = vmatpush1.msra.mxu0 0.0
  %309 = vmatprep.subr.mxu0 0.0
  %310 = vmatpush1.msra.mxu0 0.0
  %311 = vmatprep.subr.mxu0 0.0
  %312 = vmatpush1.msra.mxu0 0.0
  %313 = vmatprep.subr.mxu0 0.0
  %314 = vmatpush1.msra.mxu0 0.0
  %315 = vmatprep.subr.mxu0 0.0
  %316 = vmatpush1.msra.mxu0 0.0
  %317 = vmatprep.subr.mxu0 0.0
  %318 = vmatpush1.msra.mxu0 0.0
  %319 = vmatprep.subr.mxu0 0.0
  %320 = vmatpush1.msra.mxu0 0.0
  %321 = vmatprep.subr.mxu0 0.0
  %322 = vmatpush1.msra.mxu0 0.0
  %323 = vmatprep.subr.mxu0 0.0
  %324 = vmatpush1.msra.mxu0 0.0
  %325 = vmatprep.subr.mxu0 0.0
  %326 = vmatpush1.msra.mxu0 0.0
  %327 = vmatprep.subr.mxu0 0.0
  %328 = vmatpush1.msra.mxu0 0.0
  %329 = vmatprep.subr.mxu0 0.0
  %330 = vmatpush1.msra.mxu0 0.0
  %331 = vmatprep.subr.mxu0 0.0
  %332 = vmatpush1.msra.mxu0 0.0
  %333 = vmatprep.subr.mxu0 0.0
  %334 = vmatpush1.msra.mxu0 0.0
  %335 = vmatprep.subr.mxu0 0.0
  %336 = vmatpush1.msra.mxu0 0.0
  %337 = vmatprep.subr.mxu0 0.0
  %338 = vmatpush1.msra.mxu0 0.0
  %339 = vmatprep.subr.mxu0 0.0
  %340 = vmatpush1.msra.mxu0 0.0
  %341 = vmatprep.subr.mxu0 0.0
  %342 = vmatpush1.msra.mxu0 0.0
  %343 = vmatprep.subr.mxu0 0.0
  %344 = vmatpush1.msra.mxu0 0.0
  %345 = vmatprep.subr.mxu0 0.0
  %346 = vmatpush1.msra.mxu0 0.0
  %347 = vmatprep.subr.mxu0 0.0
  %348 = vmatpush1.msra.mxu0 0.0
  %349 = vmatprep.subr.mxu0 0.0
  %350 = vmatpush1.msra.mxu0 0.0
  %351 = vmatprep.subr.mxu0 0.0
  %352 = vmatpush1.msra.mxu0 0.0
  %353 = vmatprep.subr.mxu0 0.0
  %354 = vmatpush1.msra.mxu0 0.0
  %355 = vmatprep.subr.mxu0 0.0
  %356 = vmatpush1.msra.mxu0 0.0
  %357 = vmatprep.subr.mxu0 0.0
  %358 = vmatpush1.msra.mxu0 0.0
  %359 = vmatprep.mubr.f32.mxu0 0.0
  %360 = vmatmul.mubr.f32.gmra.mrb[0].mxu0 %v100
  %v361 = vpop.f32.mrb[0].mxu0
  %v362 = vadd.f32 %v96, %v361
  %v363 = vpop.f32.mrb[0].mxu0
  %364 = vmatprep.mubr.f32.mxu0 0.0
  %365 = vmatmul.mubr.f32.gmra.mrb[0].mxu0 %v103
  %v366 = vpop.f32.mrb[0].mxu0
  %v367 = vadd.f32 %v96, %v366
  %v368 = vpop.f32.mrb[0].mxu0
  %369 = vmatprep.mubr.f32.mxu0 0.0
  %370 = vmatmul.mubr.f32.gmra.mrb[0].mxu0 %v106
  %v371 = vpop.f32.mrb[0].mxu0
  %v372 = vadd.f32 %v96, %v371
  %v373 = vpop.f32.mrb[0].mxu0
  %374 = vmatprep.mubr.f32.mxu0 0.0
  %375 = vmatmul.mubr.f32.gmra.mrb[0].mxu0 %v109
  %v376 = vpop.f32.mrb[0].mxu0
  %v377 = vadd.f32 %v96, %v376
  %v378 = vpop.f32.mrb[0].mxu0
  %379 = vmatprep.mubr.f32.mxu0 0.0
  %380 = vmatmul.mubr.f32.gmra.mrb[0].mxu0 %v112
  %v381 = vpop.f32.mrb[0].mxu0
  %v382 = vadd.f32 %v96, %v381
  %v383 = vpop.f32.mrb[0].mxu0
  %384 = vmatprep.mubr.f32.mxu0 0.0
  %385 = vmatmul.mubr.f32.gmra.mrb[0].mxu0 %v115
  %v386 = vpop.f32.mrb[0].mxu0
  %v387 = vadd.f32 %v96, %v386
  %v388 = vpop.f32.mrb[0].mxu0
  %389 = vmatprep.mubr.f32.mxu0 0.0
  %390 = vmatmul.mubr.f32.gmra.mrb[0].mxu0 %v118
  %v391 = vpop.f32.mrb[0].mxu0
  %v392 = vadd.f32 %v96, %v391
  %v393 = vpop.f32.mrb[0].mxu0
  %394 = vmatprep.mubr.f32.mxu0 0.0
  %395 = vmatmul.mubr.f32.gmra.mrb[0].mxu0 %v121
  %v396 = vpop.f32.mrb[0].mxu0
  %v397 = vadd.f32 %v96, %v396
  %v398 = vpop.f32.mrb[0].mxu0
  %399 = vmatprep.mubr.f32.mxu0 0.0
  %400 = vmatmul.mubr.f32.gmra.mrb[0].mxu0 %v124
  %v401 = vpop.f32.mrb[0].mxu0
  %v402 = vadd.f32 %v96, %v401
  %v403 = vpop.f32.mrb[0].mxu0
  %404 = vmatprep.mubr.f32.mxu0 0.0
  %405 = vmatmul.mubr.f32.gmra.mrb[0].mxu0 %v127
  %v406 = vpop.f32.mrb[0].mxu0
  %v407 = vadd.f32 %v96, %v406
  %v408 = vpop.f32.mrb[0].mxu0
  %409 = vmatprep.mubr.f32.mxu0 0.0
  %410 = vmatmul.mubr.f32.gmra.mrb[0].mxu0 %v130
  %v411 = vpop.f32.mrb[0].mxu0
  %v412 = vadd.f32 %v96, %v411
  %v413 = vpop.f32.mrb[0].mxu0
  %414 = vmatprep.mubr.f32.mxu0 0.0
  %415 = vmatmul.mubr.f32.gmra.mrb[0].mxu0 %v133
  %v416 = vpop.f32.mrb[0].mxu0
  %v417 = vadd.f32 %v96, %v416
  %v418 = vpop.f32.mrb[0].mxu0
  %419 = vmatprep.mubr.f32.mxu0 0.0
  %420 = vmatmul.mubr.f32.gmra.mrb[0].mxu0 %v136
  %v421 = vpop.f32.mrb[0].mxu0
  %v422 = vadd.f32 %v96, %v421
  %v423 = vpop.f32.mrb[0].mxu0
  %424 = vmatprep.mubr.f32.mxu0 0.0
  %425 = vmatmul.mubr.f32.gmra.mrb[0].mxu0 %v139
  %v426 = vpop.f32.mrb[0].mxu0
  %v427 = vadd.f32 %v96, %v426
  %v428 = vpop.f32.mrb[0].mxu0
  %429 = vmatprep.mubr.f32.mxu0 0.0
  %430 = vmatmul.mubr.f32.gmra.mrb[0].mxu0 %v142
  %v431 = vpop.f32.mrb[0].mxu0
  %v432 = vadd.f32 %v96, %v431
  %v433 = vpop.f32.mrb[0].mxu0
  %434 = vmatprep.mubr.f32.mxu0 0.0
  %435 = vmatmul.mubr.f32.gmra.mrb[0].mxu0 %v145
  %v436 = vpop.f32.mrb[0].mxu0
  %v437 = vadd.f32 %v96, %v436
  %v438 = vpop.f32.mrb[0].mxu0
  %439 = vmatprep.mubr.f32.mxu0 0.0
  %440 = vmatmul.mubr.f32.gmra.mrb[0].mxu0 %v148
  %v441 = vpop.f32.mrb[0].mxu0
  %v442 = vadd.f32 %v96, %v441
  %v443 = vpop.f32.mrb[0].mxu0
  %444 = vmatprep.mubr.f32.mxu0 0.0
  %445 = vmatmul.mubr.f32.gmra.mrb[0].mxu0 %v151
  %v446 = vpop.f32.mrb[0].mxu0
  %v447 = vadd.f32 %v96, %v446
  %v448 = vpop.f32.mrb[0].mxu0
  %449 = vmatprep.mubr.f32.mxu0 0.0
  %450 = vmatmul.mubr.f32.gmra.mrb[0].mxu0 %v154
  %v451 = vpop.f32.mrb[0].mxu0
  %v452 = vadd.f32 %v96, %v451
  %v453 = vpop.f32.mrb[0].mxu0
  %454 = vmatprep.mubr.f32.mxu0 0.0
  %455 = vmatmul.mubr.f32.gmra.mrb[0].mxu0 %v157
  %v456 = vpop.f32.mrb[0].mxu0
  %v457 = vadd.f32 %v96, %v456
  %v458 = vpop.f32.mrb[0].mxu0
  %459 = vmatprep.mubr.f32.mxu0 0.0
  %460 = vmatmul.mubr.f32.gmra.mrb[0].mxu0 %v160
  %v461 = vpop.f32.mrb[0].mxu0
  %v462 = vadd.f32 %v96, %v461
  %v463 = vpop.f32.mrb[0].mxu0
  %464 = vmatprep.mubr.f32.mxu0 0.0
  %465 = vmatmul.mubr.f32.gmra.mrb[0].mxu0 %v163
  %v466 = vpop.f32.mrb[0].mxu0
  %v467 = vadd.f32 %v96, %v466
  %v468 = vpop.f32.mrb[0].mxu0
  %469 = vmatprep.mubr.f32.mxu0 0.0
  %470 = vmatmul.mubr.f32.gmra.mrb[0].mxu0 %v166
  %v471 = vpop.f32.mrb[0].mxu0
  %v472 = vadd.f32 %v96, %v471
  %v473 = vpop.f32.mrb[0].mxu0
  %474 = vmatprep.mubr.f32.mxu0 0.0
  %475 = vmatmul.mubr.f32.gmra.mrb[0].mxu0 %v169
  %v476 = vpop.f32.mrb[0].mxu0
  %v477 = vadd.f32 %v96, %v476
  %v478 = vpop.f32.mrb[0].mxu0
  %479 = vmatprep.mubr.f32.mxu0 0.0
  %480 = vmatmul.mubr.f32.gmra.mrb[0].mxu0 %v172
  %v481 = vpop.f32.mrb[0].mxu0
  %v482 = vadd.f32 %v96, %v481
  %v483 = vpop.f32.mrb[0].mxu0
  %484 = vmatprep.mubr.f32.mxu0 0.0
  %485 = vmatmul.mubr.f32.gmra.mrb[0].mxu0 %v175
  %v486 = vpop.f32.mrb[0].mxu0
  %v487 = vadd.f32 %v96, %v486
  %v488 = vpop.f32.mrb[0].mxu0
  %489 = vmatprep.mubr.f32.mxu0 0.0
  %490 = vmatmul.mubr.f32.gmra.mrb[0].mxu0 %v178
  %v491 = vpop.f32.mrb[0].mxu0
  %v492 = vadd.f32 %v96, %v491
  %v493 = vpop.f32.mrb[0].mxu0
  %494 = vmatprep.mubr.f32.mxu0 0.0
  %495 = vmatmul.mubr.f32.gmra.mrb[0].mxu0 %v181
  %v496 = vpop.f32.mrb[0].mxu0
  %v497 = vadd.f32 %v96, %v496
  %v498 = vpop.f32.mrb[0].mxu0
  %499 = vmatprep.mubr.f32.mxu0 0.0
  %500 = vmatmul.mubr.f32.gmra.mrb[0].mxu0 %v184
  %v501 = vpop.f32.mrb[0].mxu0
  %v502 = vadd.f32 %v96, %v501
  %v503 = vpop.f32.mrb[0].mxu0
  %504 = vmatprep.mubr.f32.mxu0 0.0
  %505 = vmatmul.mubr.f32.gmra.mrb[0].mxu0 %v187
  %v506 = vpop.f32.mrb[0].mxu0
  %v507 = vadd.f32 %v96, %v506
  %v508 = vpop.f32.mrb[0].mxu0
  %509 = vmatprep.mubr.f32.mxu0 0.0
  %510 = vmatmul.mubr.f32.gmra.mrb[0].mxu0 %v190
  %v511 = vpop.f32.mrb[0].mxu0
  %v512 = vadd.f32 %v96, %v511
  %v513 = vpop.f32.mrb[0].mxu0
  %514 = vmatprep.mubr.f32.mxu0 0.0
  %515 = vmatmul.mubr.f32.gmra.mrb[0].mxu0 %v193
  %v516 = vpop.f32.mrb[0].mxu0
  %v517 = vadd.f32 %v96, %v516
  %v518 = vpop.f32.mrb[0].mxu0
  %519 = vmatprep.mubr.f32.mxu0 0.0
  %520 = vmatmul.mubr.f32.gmra.mrb[0].mxu0 %v196
  %v521 = vpop.f32.mrb[0].mxu0
  %v522 = vadd.f32 %v96, %v521
  %v523 = vpop.f32.mrb[0].mxu0
  %524 = vmatprep.mubr.f32.mxu0 0.0
  %525 = vmatmul.mubr.f32.gmra.mrb[0].mxu0 %v199
  %v526 = vpop.f32.mrb[0].mxu0
  %v527 = vadd.f32 %v96, %v526
  %v528 = vpop.f32.mrb[0].mxu0
  %529 = vmatprep.mubr.f32.mxu0 0.0
  %530 = vmatmul.mubr.f32.gmra.mrb[0].mxu0 %v202
  %v531 = vpop.f32.mrb[0].mxu0
  %v532 = vadd.f32 %v96, %v531
  %v533 = vpop.f32.mrb[0].mxu0
  %534 = vmatprep.mubr.f32.mxu0 0.0
  %535 = vmatmul.mubr.f32.gmra.mrb[0].mxu0 %v205
  %v536 = vpop.f32.mrb[0].mxu0
  %v537 = vadd.f32 %v96, %v536
  %v538 = vpop.f32.mrb[0].mxu0
  %539 = vmatprep.mubr.f32.mxu0 0.0
  %540 = vmatmul.mubr.f32.gmra.mrb[0].mxu0 %v208
  %v541 = vpop.f32.mrb[0].mxu0
  %v542 = vadd.f32 %v96, %v541
  %v543 = vpop.f32.mrb[0].mxu0
  %544 = vmatprep.mubr.f32.mxu0 0.0
  %545 = vmatmul.mubr.f32.gmra.mrb[0].mxu0 %v211
  %v546 = vpop.f32.mrb[0].mxu0
  %v547 = vadd.f32 %v96, %v546
  %v548 = vpop.f32.mrb[0].mxu0
  %549 = vmatprep.mubr.f32.mxu0 0.0
  %550 = vmatmul.mubr.f32.gmra.mrb[0].mxu0 %v214
  %v551 = vpop.f32.mrb[0].mxu0
  %v552 = vadd.f32 %v96, %v551
  %v553 = vpop.f32.mrb[0].mxu0
  %554 = vmatprep.mubr.f32.mxu0 0.0
  %555 = vmatmul.mubr.f32.gmra.mrb[0].mxu0 %v217
  %v556 = vpop.f32.mrb[0].mxu0
  %v557 = vadd.f32 %v96, %v556
  %v558 = vpop.f32.mrb[0].mxu0
  %559 = vmatprep.mubr.f32.mxu0 0.0
  %560 = vmatmul.mubr.f32.gmra.mrb[0].mxu0 %v220
  %v561 = vpop.f32.mrb[0].mxu0
  %v562 = vadd.f32 %v96, %v561
  %v563 = vpop.f32.mrb[0].mxu0
  %564 = vmatprep.mubr.f32.mxu0 0.0
  %565 = vmatmul.mubr.f32.gmra.mrb[0].mxu0 %v223
  %v566 = vpop.f32.mrb[0].mxu0
  %v567 = vadd.f32 %v96, %v566
  %v568 = vpop.f32.mrb[0].mxu0
  %569 = vmatprep.mubr.f32.mxu0 0.0
  %570 = vmatmul.mubr.f32.gmra.mrb[0].mxu0 %v226
  %v571 = vpop.f32.mrb[0].mxu0
  %v572 = vadd.f32 %v96, %v571
  %v573 = vpop.f32.mrb[0].mxu0
  %574 = vmatprep.mubr.f32.mxu0 0.0
  %575 = vmatmul.mubr.f32.gmra.mrb[0].mxu0 %v229
  %v576 = vpop.f32.mrb[0].mxu0
  %v577 = vadd.f32 %v96, %v576
  %v578 = vpop.f32.mrb[0].mxu0
  %579 = vmatprep.mubr.f32.mxu0 0.0
  %580 = vmatmul.mubr.f32.gmra.mrb[0].mxu0 %v232
  %v581 = vpop.f32.mrb[0].mxu0
  %v582 = vadd.f32 %v96, %v581
  %v583 = vpop.f32.mrb[0].mxu0
  %584 = vmatprep.mubr.f32.mxu0 0.0
  %585 = vmatmul.mubr.f32.gmra.mrb[0].mxu0 %v235
  %v586 = vpop.f32.mrb[0].mxu0
  %v587 = vadd.f32 %v96, %v586
  %v588 = vpop.f32.mrb[0].mxu0
  %589 = vmatprep.mubr.f32.mxu0 0.0
  %590 = vmatmul.mubr.f32.gmra.mrb[0].mxu0 %v238
  %v591 = vpop.f32.mrb[0].mxu0
  %v592 = vadd.f32 %v96, %v591
  %v593 = vpop.f32.mrb[0].mxu0
  %594 = vmatprep.mubr.f32.mxu0 0.0
  %595 = vmatmul.mubr.f32.gmra.mrb[0].mxu0 %v241
  %v596 = vpop.f32.mrb[0].mxu0
  %v597 = vadd.f32 %v96, %v596
  %v598 = vpop.f32.mrb[0].mxu0
  %599 = vmatprep.mubr.f32.mxu0 0.0
  %600 = vmatmul.mubr.f32.gmra.mrb[0].mxu0 %v244
  %v601 = vpop.f32.mrb[0].mxu0
  %v602 = vadd.f32 %v96, %v601
  %v603 = vpop.f32.mrb[0].mxu0
  %604 = vmatprep.mubr.f32.mxu0 0.0
  %605 = vmatmul.mubr.f32.gmra.mrb[0].mxu0 %v247
  %v606 = vpop.f32.mrb[0].mxu0
  %v607 = vadd.f32 %v96, %v606
  %v608 = vpop.f32.mrb[0].mxu0
  %609 = vmatprep.mubr.f32.mxu0 0.0
  %610 = vmatmul.mubr.f32.gmra.mrb[0].mxu0 %v250
  %v611 = vpop.f32.mrb[0].mxu0
  %v612 = vadd.f32 %v96, %v611
  %v613 = vpop.f32.mrb[0].mxu0
  %614 = vmatprep.mubr.f32.mxu0 0.0
  %615 = vmatmul.mubr.f32.gmra.mrb[0].mxu0 %v253
  %v616 = vpop.f32.mrb[0].mxu0
  %v617 = vadd.f32 %v96, %v616
  %v618 = vpop.f32.mrb[0].mxu0
  %619 = vmatprep.mubr.f32.mxu0 0.0
  %620 = vmatmul.mubr.f32.gmra.mrb[0].mxu0 %v256
  %v621 = vpop.f32.mrb[0].mxu0
  %v622 = vadd.f32 %v96, %v621
  %v623 = vpop.f32.mrb[0].mxu0
  %624 = vmatprep.mubr.f32.mxu0 0.0
  %625 = vmatmul.mubr.f32.gmra.mrb[0].mxu0 %v259
  %v626 = vpop.f32.mrb[0].mxu0
  %v627 = vadd.f32 %v96, %v626
  %v628 = vpop.f32.mrb[0].mxu0
  %629 = vmatprep.mubr.f32.mxu0 0.0
  %630 = vmatmul.mubr.f32.gmra.mrb[0].mxu0 %v262
  %v631 = vpop.f32.mrb[0].mxu0
  %v632 = vadd.f32 %v96, %v631
  %v633 = vpop.f32.mrb[0].mxu0
  %634 = vmatprep.mubr.f32.mxu0 0.0
  %635 = vmatmul.mubr.f32.gmra.mrb[0].mxu0 %v265
  %v636 = vpop.f32.mrb[0].mxu0
  %v637 = vadd.f32 %v96, %v636
  %v638 = vpop.f32.mrb[0].mxu0
  %639 = vmatprep.mubr.f32.mxu0 0.0
  %640 = vmatmul.mubr.f32.gmra.mrb[0].mxu0 %v268
  %v641 = vpop.f32.mrb[0].mxu0
  %v642 = vadd.f32 %v96, %v641
  %v643 = vpop.f32.mrb[0].mxu0
  %644 = vmatprep.mubr.f32.mxu0 0.0
  %645 = vmatmul.mubr.f32.gmra.mrb[0].mxu0 %v271
  %v646 = vpop.f32.mrb[0].mxu0
  %v647 = vadd.f32 %v96, %v646
  %v648 = vpop.f32.mrb[0].mxu0
  %649 = vmatprep.mubr.f32.mxu0 0.0
  %650 = vmatmul.mubr.f32.gmra.mrb[0].mxu0 %v274
  %v651 = vpop.f32.mrb[0].mxu0
  %v652 = vadd.f32 %v96, %v651
  %v653 = vpop.f32.mrb[0].mxu0
  %654 = vmatprep.mubr.f32.mxu0 0.0
  %655 = vmatmul.mubr.f32.gmra.mrb[0].mxu0 %v277
  %v656 = vpop.f32.mrb[0].mxu0
  %v657 = vadd.f32 %v96, %v656
  %v658 = vpop.f32.mrb[0].mxu0
  %659 = vmatprep.mubr.f32.mxu0 0.0
  %660 = vmatmul.mubr.f32.gmra.mrb[0].mxu0 %v280
  %v661 = vpop.f32.mrb[0].mxu0
  %v662 = vadd.f32 %v96, %v661
  %v663 = vpop.f32.mrb[0].mxu0
  %664 = vmatprep.mubr.f32.mxu0 0.0
  %665 = vmatmul.mubr.f32.gmra.mrb[0].mxu0 %v283
  %v666 = vpop.f32.mrb[0].mxu0
  %v667 = vadd.f32 %v96, %v666
  %v668 = vpop.f32.mrb[0].mxu0
  %669 = vmatprep.mubr.f32.mxu0 0.0
  %670 = vmatmul.mubr.f32.gmra.mrb[0].mxu0 %v286
  %v671 = vpop.f32.mrb[0].mxu0
  %v672 = vadd.f32 %v96, %v671
  %v673 = vpop.f32.mrb[0].mxu0
  %674 = vmatprep.mubr.f32.mxu0 0.0
  %675 = vmatmul.mubr.f32.gmra.mrb[0].mxu0 %v289
  %v676 = vpop.f32.mrb[0].mxu0
  %v677 = vadd.f32 %v96, %v676
  %v678 = vpop.f32.mrb[0].mxu0
  %679 = vdwg.mxu0
  %v680 = vld [vmem:[%s3] sm:$0xff]
  %v681 = vld [vmem:[%s3 + $0x8] sm:$0xff]
  %v682 = vld [vmem:[%s3 + $0x10] sm:$0xff]
  %v683 = vld [vmem:[%s3 + $0x18] sm:$0xff]
  %v684 = vld [vmem:[%s4] sm:$0x1]
  %v686 = vlaneseq
  %v687 = vshrl.u32 %v686, 7
  %v688 = vsub.s32 0, %v687
  %v689 = vrot.slane %v684, %v688
  %vm691 = vcmask 261120
  %v693 = vsel %vm691, %v362, 0
  %v696 = vsel %vm691, %v367, 0
  %v699 = vsel %vm691, %v372, 0
  %v702 = vsel %vm691, %v377, 0
  %v705 = vsel %vm691, %v382, 0
  %v708 = vsel %vm691, %v387, 0
  %v711 = vsel %vm691, %v392, 0
  %v714 = vsel %vm691, %v397, 0
  %v717 = vsel %vm691, %v402, 0
  %v720 = vsel %vm691, %v407, 0
  %v723 = vsel %vm691, %v412, 0
  %v726 = vsel %vm691, %v417, 0
  %v729 = vsel %vm691, %v422, 0
  %v732 = vsel %vm691, %v427, 0
  %v735 = vsel %vm691, %v432, 0
  %v738 = vsel %vm691, %v437, 0
  %v741 = vsel %vm691, %v442, 0
  %v744 = vsel %vm691, %v447, 0
  %v747 = vsel %vm691, %v452, 0
  %v750 = vsel %vm691, %v457, 0
  %v753 = vsel %vm691, %v462, 0
  %v756 = vsel %vm691, %v467, 0
  %v759 = vsel %vm691, %v472, 0
  %v762 = vsel %vm691, %v477, 0
  %v765 = vsel %vm691, %v482, 0
  %v768 = vsel %vm691, %v487, 0
  %v771 = vsel %vm691, %v492, 0
  %v774 = vsel %vm691, %v497, 0
  %v777 = vsel %vm691, %v502, 0
  %v780 = vsel %vm691, %v507, 0
  %v783 = vsel %vm691, %v512, 0
  %v786 = vsel %vm691, %v517, 0
  %v789 = vsel %vm691, %v522, 0
  %v792 = vsel %vm691, %v527, 0
  %v795 = vsel %vm691, %v532, 0
  %v798 = vsel %vm691, %v537, 0
  %v801 = vsel %vm691, %v542, 0
  %v804 = vsel %vm691, %v547, 0
  %v807 = vsel %vm691, %v552, 0
  %v810 = vsel %vm691, %v557, 0
  %v813 = vsel %vm691, %v562, 0
  %v816 = vsel %vm691, %v567, 0
  %v819 = vsel %vm691, %v572, 0
  %v822 = vsel %vm691, %v577, 0
  %v825 = vsel %vm691, %v582, 0
  %v828 = vsel %vm691, %v587, 0
  %v831 = vsel %vm691, %v592, 0
  %v834 = vsel %vm691, %v597, 0
  %v837 = vsel %vm691, %v602, 0
  %v840 = vsel %vm691, %v607, 0
  %v843 = vsel %vm691, %v612, 0
  %v846 = vsel %vm691, %v617, 0
  %v849 = vsel %vm691, %v622, 0
  %v852 = vsel %vm691, %v627, 0
  %v855 = vsel %vm691, %v632, 0
  %v858 = vsel %vm691, %v637, 0
  %v861 = vsel %vm691, %v642, 0
  %v864 = vsel %vm691, %v647, 0
  %v867 = vsel %vm691, %v652, 0
  %v870 = vsel %vm691, %v657, 0
  %v873 = vsel %vm691, %v662, 0
  %v876 = vsel %vm691, %v667, 0
  %v879 = vsel %vm691, %v672, 0
  %v882 = vsel %vm691, %v677, 0
  %884 = vmatprep.subr.mxu0 0.0
  %885 = vmatpush1.msra.mxu0 %v680
  %886 = vmatprep.subr.mxu0 0.0
  %887 = vmatpush1.msra.mxu0 %v681
  %888 = vmatprep.subr.mxu0 0.0
  %889 = vmatpush1.msra.mxu0 %v682
  %890 = vmatprep.subr.mxu0 0.0
  %891 = vmatpush1.msra.mxu0 %v683
  %892 = vmatprep.subr.mxu0 0.0
  %893 = vmatpush1.msra.mxu0 0.0
  %894 = vmatprep.subr.mxu0 0.0
  %895 = vmatpush1.msra.mxu0 0.0
  %896 = vmatprep.subr.mxu0 0.0
  %897 = vmatpush1.msra.mxu0 0.0
  %898 = vmatprep.subr.mxu0 0.0
  %899 = vmatpush1.msra.mxu0 0.0
  %900 = vmatprep.subr.mxu0 0.0
  %901 = vmatpush1.msra.mxu0 0.0
  %902 = vmatprep.subr.mxu0 0.0
  %903 = vmatpush1.msra.mxu0 0.0
  %904 = vmatprep.subr.mxu0 0.0
  %905 = vmatpush1.msra.mxu0 0.0
  %906 = vmatprep.subr.mxu0 0.0
  %907 = vmatpush1.msra.mxu0 0.0
  %908 = vmatprep.subr.mxu0 0.0
  %909 = vmatpush1.msra.mxu0 0.0
  %910 = vmatprep.subr.mxu0 0.0
  %911 = vmatpush1.msra.mxu0 0.0
  %912 = vmatprep.subr.mxu0 0.0
  %913 = vmatpush1.msra.mxu0 0.0
  %914 = vmatprep.subr.mxu0 0.0
  %915 = vmatpush1.msra.mxu0 0.0
  %916 = vmatprep.subr.mxu0 0.0
  %917 = vmatpush1.msra.mxu0 0.0
  %918 = vmatprep.subr.mxu0 0.0
  %919 = vmatpush1.msra.mxu0 0.0
  %920 = vmatprep.subr.mxu0 0.0
  %921 = vmatpush1.msra.mxu0 0.0
  %922 = vmatprep.subr.mxu0 0.0
  %923 = vmatpush1.msra.mxu0 0.0
  %924 = vmatprep.subr.mxu0 0.0
  %925 = vmatpush1.msra.mxu0 0.0
  %926 = vmatprep.subr.mxu0 0.0
  %927 = vmatpush1.msra.mxu0 0.0
  %928 = vmatprep.subr.mxu0 0.0
  %929 = vmatpush1.msra.mxu0 0.0
  %930 = vmatprep.subr.mxu0 0.0
  %931 = vmatpush1.msra.mxu0 0.0
  %932 = vmatprep.subr.mxu0 0.0
  %933 = vmatpush1.msra.mxu0 0.0
  %934 = vmatprep.subr.mxu0 0.0
  %935 = vmatpush1.msra.mxu0 0.0
  %936 = vmatprep.subr.mxu0 0.0
  %937 = vmatpush1.msra.mxu0 0.0
  %938 = vmatprep.subr.mxu0 0.0
  %939 = vmatpush1.msra.mxu0 0.0
  %940 = vmatprep.subr.mxu0 0.0
  %941 = vmatpush1.msra.mxu0 0.0
  %942 = vmatprep.subr.mxu0 0.0
  %943 = vmatpush1.msra.mxu0 0.0
  %944 = vmatprep.subr.mxu0 0.0
  %945 = vmatpush1.msra.mxu0 0.0
  %946 = vmatprep.subr.mxu0 0.0
  %947 = vmatpush1.msra.mxu0 0.0
  %948 = vmatprep.mubr.f32.mxu0 0.0
  %949 = vmatmul.mubr.f32.gmra.mrb[0].mxu0 %v693
  %v950 = vpop.f32.mrb[0].mxu0
  %v951 = vadd.f32 %v689, %v950
  %v952 = vpop.f32.mrb[0].mxu0
  %953 = vmatprep.mubr.f32.mxu0 0.0
  %954 = vmatmul.mubr.f32.gmra.mrb[0].mxu0 %v696
  %v955 = vpop.f32.mrb[0].mxu0
  %v956 = vadd.f32 %v689, %v955
  %v957 = vpop.f32.mrb[0].mxu0
  %958 = vmatprep.mubr.f32.mxu0 0.0
  %959 = vmatmul.mubr.f32.gmra.mrb[0].mxu0 %v699
  %v960 = vpop.f32.mrb[0].mxu0
  %v961 = vadd.f32 %v689, %v960
  %v962 = vpop.f32.mrb[0].mxu0
  %963 = vmatprep.mubr.f32.mxu0 0.0
  %964 = vmatmul.mubr.f32.gmra.mrb[0].mxu0 %v702
  %v965 = vpop.f32.mrb[0].mxu0
  %v966 = vadd.f32 %v689, %v965
  %v967 = vpop.f32.mrb[0].mxu0
  %968 = vmatprep.mubr.f32.mxu0 0.0
  %969 = vmatmul.mubr.f32.gmra.mrb[0].mxu0 %v705
  %v970 = vpop.f32.mrb[0].mxu0
  %v971 = vadd.f32 %v689, %v970
  %v972 = vpop.f32.mrb[0].mxu0
  %973 = vmatprep.mubr.f32.mxu0 0.0
  %974 = vmatmul.mubr.f32.gmra.mrb[0].mxu0 %v708
  %v975 = vpop.f32.mrb[0].mxu0
  %v976 = vadd.f32 %v689, %v975
  %v977 = vpop.f32.mrb[0].mxu0
  %978 = vmatprep.mubr.f32.mxu0 0.0
  %979 = vmatmul.mubr.f32.gmra.mrb[0].mxu0 %v711
  %v980 = vpop.f32.mrb[0].mxu0
  %v981 = vadd.f32 %v689, %v980
  %v982 = vpop.f32.mrb[0].mxu0
  %983 = vmatprep.mubr.f32.mxu0 0.0
  %984 = vmatmul.mubr.f32.gmra.mrb[0].mxu0 %v714
  %v985 = vpop.f32.mrb[0].mxu0
  %v986 = vadd.f32 %v689, %v985
  %v987 = vpop.f32.mrb[0].mxu0
  %988 = vmatprep.mubr.f32.mxu0 0.0
  %989 = vmatmul.mubr.f32.gmra.mrb[0].mxu0 %v717
  %v990 = vpop.f32.mrb[0].mxu0
  %v991 = vadd.f32 %v689, %v990
  %v992 = vpop.f32.mrb[0].mxu0
  %993 = vmatprep.mubr.f32.mxu0 0.0
  %994 = vmatmul.mubr.f32.gmra.mrb[0].mxu0 %v720
  %v995 = vpop.f32.mrb[0].mxu0
  %v996 = vadd.f32 %v689, %v995
  %v997 = vpop.f32.mrb[0].mxu0
  %998 = vmatprep.mubr.f32.mxu0 0.0
  %999 = vmatmul.mubr.f32.gmra.mrb[0].mxu0 %v723
  %v1000 = vpop.f32.mrb[0].mxu0
  %v1001 = vadd.f32 %v689, %v1000
  %v1002 = vpop.f32.mrb[0].mxu0
  %1003 = vmatprep.mubr.f32.mxu0 0.0
  %1004 = vmatmul.mubr.f32.gmra.mrb[0].mxu0 %v726
  %v1005 = vpop.f32.mrb[0].mxu0
  %v1006 = vadd.f32 %v689, %v1005
  %v1007 = vpop.f32.mrb[0].mxu0
  %1008 = vmatprep.mubr.f32.mxu0 0.0
  %1009 = vmatmul.mubr.f32.gmra.mrb[0].mxu0 %v729
  %v1010 = vpop.f32.mrb[0].mxu0
  %v1011 = vadd.f32 %v689, %v1010
  %v1012 = vpop.f32.mrb[0].mxu0
  %1013 = vmatprep.mubr.f32.mxu0 0.0
  %1014 = vmatmul.mubr.f32.gmra.mrb[0].mxu0 %v732
  %v1015 = vpop.f32.mrb[0].mxu0
  %v1016 = vadd.f32 %v689, %v1015
  %v1017 = vpop.f32.mrb[0].mxu0
  %1018 = vmatprep.mubr.f32.mxu0 0.0
  %1019 = vmatmul.mubr.f32.gmra.mrb[0].mxu0 %v735
  %v1020 = vpop.f32.mrb[0].mxu0
  %v1021 = vadd.f32 %v689, %v1020
  %v1022 = vpop.f32.mrb[0].mxu0
  %1023 = vmatprep.mubr.f32.mxu0 0.0
  %1024 = vmatmul.mubr.f32.gmra.mrb[0].mxu0 %v738
  %v1025 = vpop.f32.mrb[0].mxu0
  %v1026 = vadd.f32 %v689, %v1025
  %v1027 = vpop.f32.mrb[0].mxu0
  %1028 = vmatprep.mubr.f32.mxu0 0.0
  %1029 = vmatmul.mubr.f32.gmra.mrb[0].mxu0 %v741
  %v1030 = vpop.f32.mrb[0].mxu0
  %v1031 = vadd.f32 %v689, %v1030
  %v1032 = vpop.f32.mrb[0].mxu0
  %1033 = vmatprep.mubr.f32.mxu0 0.0
  %1034 = vmatmul.mubr.f32.gmra.mrb[0].mxu0 %v744
  %v1035 = vpop.f32.mrb[0].mxu0
  %v1036 = vadd.f32 %v689, %v1035
  %v1037 = vpop.f32.mrb[0].mxu0
  %1038 = vmatprep.mubr.f32.mxu0 0.0
  %1039 = vmatmul.mubr.f32.gmra.mrb[0].mxu0 %v747
  %v1040 = vpop.f32.mrb[0].mxu0
  %v1041 = vadd.f32 %v689, %v1040
  %v1042 = vpop.f32.mrb[0].mxu0
  %1043 = vmatprep.mubr.f32.mxu0 0.0
  %1044 = vmatmul.mubr.f32.gmra.mrb[0].mxu0 %v750
  %v1045 = vpop.f32.mrb[0].mxu0
  %v1046 = vadd.f32 %v689, %v1045
  %v1047 = vpop.f32.mrb[0].mxu0
  %1048 = vmatprep.mubr.f32.mxu0 0.0
  %1049 = vmatmul.mubr.f32.gmra.mrb[0].mxu0 %v753
  %v1050 = vpop.f32.mrb[0].mxu0
  %v1051 = vadd.f32 %v689, %v1050
  %v1052 = vpop.f32.mrb[0].mxu0
  %1053 = vmatprep.mubr.f32.mxu0 0.0
  %1054 = vmatmul.mubr.f32.gmra.mrb[0].mxu0 %v756
  %v1055 = vpop.f32.mrb[0].mxu0
  %v1056 = vadd.f32 %v689, %v1055
  %v1057 = vpop.f32.mrb[0].mxu0
  %1058 = vmatprep.mubr.f32.mxu0 0.0
  %1059 = vmatmul.mubr.f32.gmra.mrb[0].mxu0 %v759
  %v1060 = vpop.f32.mrb[0].mxu0
  %v1061 = vadd.f32 %v689, %v1060
  %v1062 = vpop.f32.mrb[0].mxu0
  %1063 = vmatprep.mubr.f32.mxu0 0.0
  %1064 = vmatmul.mubr.f32.gmra.mrb[0].mxu0 %v762
  %v1065 = vpop.f32.mrb[0].mxu0
  %v1066 = vadd.f32 %v689, %v1065
  %v1067 = vpop.f32.mrb[0].mxu0
  %1068 = vmatprep.mubr.f32.mxu0 0.0
  %1069 = vmatmul.mubr.f32.gmra.mrb[0].mxu0 %v765
  %v1070 = vpop.f32.mrb[0].mxu0
  %v1071 = vadd.f32 %v689, %v1070
  %v1072 = vpop.f32.mrb[0].mxu0
  %1073 = vmatprep.mubr.f32.mxu0 0.0
  %1074 = vmatmul.mubr.f32.gmra.mrb[0].mxu0 %v768
  %v1075 = vpop.f32.mrb[0].mxu0
  %v1076 = vadd.f32 %v689, %v1075
  %v1077 = vpop.f32.mrb[0].mxu0
  %1078 = vmatprep.mubr.f32.mxu0 0.0
  %1079 = vmatmul.mubr.f32.gmra.mrb[0].mxu0 %v771
  %v1080 = vpop.f32.mrb[0].mxu0
  %v1081 = vadd.f32 %v689, %v1080
  %v1082 = vpop.f32.mrb[0].mxu0
  %1083 = vmatprep.mubr.f32.mxu0 0.0
  %1084 = vmatmul.mubr.f32.gmra.mrb[0].mxu0 %v774
  %v1085 = vpop.f32.mrb[0].mxu0
  %v1086 = vadd.f32 %v689, %v1085
  %v1087 = vpop.f32.mrb[0].mxu0
  %1088 = vmatprep.mubr.f32.mxu0 0.0
  %1089 = vmatmul.mubr.f32.gmra.mrb[0].mxu0 %v777
  %v1090 = vpop.f32.mrb[0].mxu0
  %v1091 = vadd.f32 %v689, %v1090
  %v1092 = vpop.f32.mrb[0].mxu0
  %1093 = vmatprep.mubr.f32.mxu0 0.0
  %1094 = vmatmul.mubr.f32.gmra.mrb[0].mxu0 %v780
  %v1095 = vpop.f32.mrb[0].mxu0
  %v1096 = vadd.f32 %v689, %v1095
  %v1097 = vpop.f32.mrb[0].mxu0
  %1098 = vmatprep.mubr.f32.mxu0 0.0
  %1099 = vmatmul.mubr.f32.gmra.mrb[0].mxu0 %v783
  %v1100 = vpop.f32.mrb[0].mxu0
  %v1101 = vadd.f32 %v689, %v1100
  %v1102 = vpop.f32.mrb[0].mxu0
  %1103 = vmatprep.mubr.f32.mxu0 0.0
  %1104 = vmatmul.mubr.f32.gmra.mrb[0].mxu0 %v786
  %v1105 = vpop.f32.mrb[0].mxu0
  %v1106 = vadd.f32 %v689, %v1105
  %v1107 = vpop.f32.mrb[0].mxu0
  %1108 = vmatprep.mubr.f32.mxu0 0.0
  %1109 = vmatmul.mubr.f32.gmra.mrb[0].mxu0 %v789
  %v1110 = vpop.f32.mrb[0].mxu0
  %v1111 = vadd.f32 %v689, %v1110
  %v1112 = vpop.f32.mrb[0].mxu0
  %1113 = vmatprep.mubr.f32.mxu0 0.0
  %1114 = vmatmul.mubr.f32.gmra.mrb[0].mxu0 %v792
  %v1115 = vpop.f32.mrb[0].mxu0
  %v1116 = vadd.f32 %v689, %v1115
  %v1117 = vpop.f32.mrb[0].mxu0
  %1118 = vmatprep.mubr.f32.mxu0 0.0
  %1119 = vmatmul.mubr.f32.gmra.mrb[0].mxu0 %v795
  %v1120 = vpop.f32.mrb[0].mxu0
  %v1121 = vadd.f32 %v689, %v1120
  %v1122 = vpop.f32.mrb[0].mxu0
  %1123 = vmatprep.mubr.f32.mxu0 0.0
  %1124 = vmatmul.mubr.f32.gmra.mrb[0].mxu0 %v798
  %v1125 = vpop.f32.mrb[0].mxu0
  %v1126 = vadd.f32 %v689, %v1125
  %v1127 = vpop.f32.mrb[0].mxu0
  %1128 = vmatprep.mubr.f32.mxu0 0.0
  %1129 = vmatmul.mubr.f32.gmra.mrb[0].mxu0 %v801
  %v1130 = vpop.f32.mrb[0].mxu0
  %v1131 = vadd.f32 %v689, %v1130
  %v1132 = vpop.f32.mrb[0].mxu0
  %1133 = vmatprep.mubr.f32.mxu0 0.0
  %1134 = vmatmul.mubr.f32.gmra.mrb[0].mxu0 %v804
  %v1135 = vpop.f32.mrb[0].mxu0
  %v1136 = vadd.f32 %v689, %v1135
  %v1137 = vpop.f32.mrb[0].mxu0
  %1138 = vmatprep.mubr.f32.mxu0 0.0
  %1139 = vmatmul.mubr.f32.gmra.mrb[0].mxu0 %v807
  %v1140 = vpop.f32.mrb[0].mxu0
  %v1141 = vadd.f32 %v689, %v1140
  %v1142 = vpop.f32.mrb[0].mxu0
  %1143 = vmatprep.mubr.f32.mxu0 0.0
  %1144 = vmatmul.mubr.f32.gmra.mrb[0].mxu0 %v810
  %v1145 = vpop.f32.mrb[0].mxu0
  %v1146 = vadd.f32 %v689, %v1145
  %v1147 = vpop.f32.mrb[0].mxu0
  %1148 = vmatprep.mubr.f32.mxu0 0.0
  %1149 = vmatmul.mubr.f32.gmra.mrb[0].mxu0 %v813
  %v1150 = vpop.f32.mrb[0].mxu0
  %v1151 = vadd.f32 %v689, %v1150
  %v1152 = vpop.f32.mrb[0].mxu0
  %1153 = vmatprep.mubr.f32.mxu0 0.0
  %1154 = vmatmul.mubr.f32.gmra.mrb[0].mxu0 %v816
  %v1155 = vpop.f32.mrb[0].mxu0
  %v1156 = vadd.f32 %v689, %v1155
  %v1157 = vpop.f32.mrb[0].mxu0
  %1158 = vmatprep.mubr.f32.mxu0 0.0
  %1159 = vmatmul.mubr.f32.gmra.mrb[0].mxu0 %v819
  %v1160 = vpop.f32.mrb[0].mxu0
  %v1161 = vadd.f32 %v689, %v1160
  %v1162 = vpop.f32.mrb[0].mxu0
  %1163 = vmatprep.mubr.f32.mxu0 0.0
  %1164 = vmatmul.mubr.f32.gmra.mrb[0].mxu0 %v822
  %v1165 = vpop.f32.mrb[0].mxu0
  %v1166 = vadd.f32 %v689, %v1165
  %v1167 = vpop.f32.mrb[0].mxu0
  %1168 = vmatprep.mubr.f32.mxu0 0.0
  %1169 = vmatmul.mubr.f32.gmra.mrb[0].mxu0 %v825
  %v1170 = vpop.f32.mrb[0].mxu0
  %v1171 = vadd.f32 %v689, %v1170
  %v1172 = vpop.f32.mrb[0].mxu0
  %1173 = vmatprep.mubr.f32.mxu0 0.0
  %1174 = vmatmul.mubr.f32.gmra.mrb[0].mxu0 %v828
  %v1175 = vpop.f32.mrb[0].mxu0
  %v1176 = vadd.f32 %v689, %v1175
  %v1177 = vpop.f32.mrb[0].mxu0
  %1178 = vmatprep.mubr.f32.mxu0 0.0
  %1179 = vmatmul.mubr.f32.gmra.mrb[0].mxu0 %v831
  %v1180 = vpop.f32.mrb[0].mxu0
  %v1181 = vadd.f32 %v689, %v1180
  %v1182 = vpop.f32.mrb[0].mxu0
  %1183 = vmatprep.mubr.f32.mxu0 0.0
  %1184 = vmatmul.mubr.f32.gmra.mrb[0].mxu0 %v834
  %v1185 = vpop.f32.mrb[0].mxu0
  %v1186 = vadd.f32 %v689, %v1185
  %v1187 = vpop.f32.mrb[0].mxu0
  %1188 = vmatprep.mubr.f32.mxu0 0.0
  %1189 = vmatmul.mubr.f32.gmra.mrb[0].mxu0 %v837
  %v1190 = vpop.f32.mrb[0].mxu0
  %v1191 = vadd.f32 %v689, %v1190
  %v1192 = vpop.f32.mrb[0].mxu0
  %1193 = vmatprep.mubr.f32.mxu0 0.0
  %1194 = vmatmul.mubr.f32.gmra.mrb[0].mxu0 %v840
  %v1195 = vpop.f32.mrb[0].mxu0
  %v1196 = vadd.f32 %v689, %v1195
  %v1197 = vpop.f32.mrb[0].mxu0
  %1198 = vmatprep.mubr.f32.mxu0 0.0
  %1199 = vmatmul.mubr.f32.gmra.mrb[0].mxu0 %v843
  %v1200 = vpop.f32.mrb[0].mxu0
  %v1201 = vadd.f32 %v689, %v1200
  %v1202 = vpop.f32.mrb[0].mxu0
  %1203 = vmatprep.mubr.f32.mxu0 0.0
  %1204 = vmatmul.mubr.f32.gmra.mrb[0].mxu0 %v846
  %v1205 = vpop.f32.mrb[0].mxu0
  %v1206 = vadd.f32 %v689, %v1205
  %v1207 = vpop.f32.mrb[0].mxu0
  %1208 = vmatprep.mubr.f32.mxu0 0.0
  %1209 = vmatmul.mubr.f32.gmra.mrb[0].mxu0 %v849
  %v1210 = vpop.f32.mrb[0].mxu0
  %v1211 = vadd.f32 %v689, %v1210
  %v1212 = vpop.f32.mrb[0].mxu0
  %1213 = vmatprep.mubr.f32.mxu0 0.0
  %1214 = vmatmul.mubr.f32.gmra.mrb[0].mxu0 %v852
  %v1215 = vpop.f32.mrb[0].mxu0
  %v1216 = vadd.f32 %v689, %v1215
  %v1217 = vpop.f32.mrb[0].mxu0
  %1218 = vmatprep.mubr.f32.mxu0 0.0
  %1219 = vmatmul.mubr.f32.gmra.mrb[0].mxu0 %v855
  %v1220 = vpop.f32.mrb[0].mxu0
  %v1221 = vadd.f32 %v689, %v1220
  %v1222 = vpop.f32.mrb[0].mxu0
  %1223 = vmatprep.mubr.f32.mxu0 0.0
  %1224 = vmatmul.mubr.f32.gmra.mrb[0].mxu0 %v858
  %v1225 = vpop.f32.mrb[0].mxu0
  %v1226 = vadd.f32 %v689, %v1225
  %v1227 = vpop.f32.mrb[0].mxu0
  %1228 = vmatprep.mubr.f32.mxu0 0.0
  %1229 = vmatmul.mubr.f32.gmra.mrb[0].mxu0 %v861
  %v1230 = vpop.f32.mrb[0].mxu0
  %v1231 = vadd.f32 %v689, %v1230
  %v1232 = vpop.f32.mrb[0].mxu0
  %1233 = vmatprep.mubr.f32.mxu0 0.0
  %1234 = vmatmul.mubr.f32.gmra.mrb[0].mxu0 %v864
  %v1235 = vpop.f32.mrb[0].mxu0
  %v1236 = vadd.f32 %v689, %v1235
  %v1237 = vpop.f32.mrb[0].mxu0
  %1238 = vmatprep.mubr.f32.mxu0 0.0
  %1239 = vmatmul.mubr.f32.gmra.mrb[0].mxu0 %v867
  %v1240 = vpop.f32.mrb[0].mxu0
  %v1241 = vadd.f32 %v689, %v1240
  %v1242 = vpop.f32.mrb[0].mxu0
  %1243 = vmatprep.mubr.f32.mxu0 0.0
  %1244 = vmatmul.mubr.f32.gmra.mrb[0].mxu0 %v870
  %v1245 = vpop.f32.mrb[0].mxu0
  %v1246 = vadd.f32 %v689, %v1245
  %v1247 = vpop.f32.mrb[0].mxu0
  %1248 = vmatprep.mubr.f32.mxu0 0.0
  %1249 = vmatmul.mubr.f32.gmra.mrb[0].mxu0 %v873
  %v1250 = vpop.f32.mrb[0].mxu0
  %v1251 = vadd.f32 %v689, %v1250
  %v1252 = vpop.f32.mrb[0].mxu0
  %1253 = vmatprep.mubr.f32.mxu0 0.0
  %1254 = vmatmul.mubr.f32.gmra.mrb[0].mxu0 %v876
  %v1255 = vpop.f32.mrb[0].mxu0
  %v1256 = vadd.f32 %v689, %v1255
  %v1257 = vpop.f32.mrb[0].mxu0
  %1258 = vmatprep.mubr.f32.mxu0 0.0
  %1259 = vmatmul.mubr.f32.gmra.mrb[0].mxu0 %v879
  %v1260 = vpop.f32.mrb[0].mxu0
  %v1261 = vadd.f32 %v689, %v1260
  %v1262 = vpop.f32.mrb[0].mxu0
  %1263 = vmatprep.mubr.f32.mxu0 0.0
  %1264 = vmatmul.mubr.f32.gmra.mrb[0].mxu0 %v882
  %v1265 = vpop.f32.mrb[0].mxu0
  %v1266 = vadd.f32 %v689, %v1265
  %v1267 = vpop.f32.mrb[0].mxu0
  %1268 = vdwg.mxu0
  %v1269 = vld [vmem:[%s5] sm:$0xff]
  %v1270 = vld [vmem:[%s5 + $0x8] sm:$0xff]
  %v1271 = vld [vmem:[%s6] sm:$0x1]
  %v1273 = vlaneseq
  %v1274 = vshrl.u32 %v1273, 7
  %v1275 = vsub.s32 0, %v1274
  %v1276 = vrot.slane %v1271, %v1275
  %vm1278 = vcmask 130048
  %v1280 = vsel %vm1278, %v951, 0
  %v1283 = vsel %vm1278, %v956, 0
  %v1286 = vsel %vm1278, %v961, 0
  %v1289 = vsel %vm1278, %v966, 0
  %v1292 = vsel %vm1278, %v971, 0
  %v1295 = vsel %vm1278, %v976, 0
  %v1298 = vsel %vm1278, %v981, 0
  %v1301 = vsel %vm1278, %v986, 0
  %v1304 = vsel %vm1278, %v991, 0
  %v1307 = vsel %vm1278, %v996, 0
  %v1310 = vsel %vm1278, %v1001, 0
  %v1313 = vsel %vm1278, %v1006, 0
  %v1316 = vsel %vm1278, %v1011, 0
  %v1319 = vsel %vm1278, %v1016, 0
  %v1322 = vsel %vm1278, %v1021, 0
  %v1325 = vsel %vm1278, %v1026, 0
  %v1328 = vsel %vm1278, %v1031, 0
  %v1331 = vsel %vm1278, %v1036, 0
  %v1334 = vsel %vm1278, %v1041, 0
  %v1337 = vsel %vm1278, %v1046, 0
  %v1340 = vsel %vm1278, %v1051, 0
  %v1343 = vsel %vm1278, %v1056, 0
  %v1346 = vsel %vm1278, %v1061, 0
  %v1349 = vsel %vm1278, %v1066, 0
  %v1352 = vsel %vm1278, %v1071, 0
  %v1355 = vsel %vm1278, %v1076, 0
  %v1358 = vsel %vm1278, %v1081, 0
  %v1361 = vsel %vm1278, %v1086, 0
  %v1364 = vsel %vm1278, %v1091, 0
  %v1367 = vsel %vm1278, %v1096, 0
  %v1370 = vsel %vm1278, %v1101, 0
  %v1373 = vsel %vm1278, %v1106, 0
  %v1376 = vsel %vm1278, %v1111, 0
  %v1379 = vsel %vm1278, %v1116, 0
  %v1382 = vsel %vm1278, %v1121, 0
  %v1385 = vsel %vm1278, %v1126, 0
  %v1388 = vsel %vm1278, %v1131, 0
  %v1391 = vsel %vm1278, %v1136, 0
  %v1394 = vsel %vm1278, %v1141, 0
  %v1397 = vsel %vm1278, %v1146, 0
  %v1400 = vsel %vm1278, %v1151, 0
  %v1403 = vsel %vm1278, %v1156, 0
  %v1406 = vsel %vm1278, %v1161, 0
  %v1409 = vsel %vm1278, %v1166, 0
  %v1412 = vsel %vm1278, %v1171, 0
  %v1415 = vsel %vm1278, %v1176, 0
  %v1418 = vsel %vm1278, %v1181, 0
  %v1421 = vsel %vm1278, %v1186, 0
  %v1424 = vsel %vm1278, %v1191, 0
  %v1427 = vsel %vm1278, %v1196, 0
  %v1430 = vsel %vm1278, %v1201, 0
  %v1433 = vsel %vm1278, %v1206, 0
  %v1436 = vsel %vm1278, %v1211, 0
  %v1439 = vsel %vm1278, %v1216, 0
  %v1442 = vsel %vm1278, %v1221, 0
  %v1445 = vsel %vm1278, %v1226, 0
  %v1448 = vsel %vm1278, %v1231, 0
  %v1451 = vsel %vm1278, %v1236, 0
  %v1454 = vsel %vm1278, %v1241, 0
  %v1457 = vsel %vm1278, %v1246, 0
  %v1460 = vsel %vm1278, %v1251, 0
  %v1463 = vsel %vm1278, %v1256, 0
  %v1466 = vsel %vm1278, %v1261, 0
  %v1469 = vsel %vm1278, %v1266, 0
  %1471 = vmatprep.subr.mxu0 0.0
  %1472 = vmatpush1.msra.mxu0 %v1269
  %1473 = vmatprep.subr.mxu0 0.0
  %1474 = vmatpush1.msra.mxu0 %v1270
  %1475 = vmatprep.subr.mxu0 0.0
  %1476 = vmatpush1.msra.mxu0 0.0
  %1477 = vmatprep.subr.mxu0 0.0
  %1478 = vmatpush1.msra.mxu0 0.0
  %1479 = vmatprep.subr.mxu0 0.0
  %1480 = vmatpush1.msra.mxu0 0.0
  %1481 = vmatprep.subr.mxu0 0.0
  %1482 = vmatpush1.msra.mxu0 0.0
  %1483 = vmatprep.subr.mxu0 0.0
  %1484 = vmatpush1.msra.mxu0 0.0
  %1485 = vmatprep.subr.mxu0 0.0
  %1486 = vmatpush1.msra.mxu0 0.0
  %1487 = vmatprep.subr.mxu0 0.0
  %1488 = vmatpush1.msra.mxu0 0.0
  %1489 = vmatprep.subr.mxu0 0.0
  %1490 = vmatpush1.msra.mxu0 0.0
  %1491 = vmatprep.subr.mxu0 0.0
  %1492 = vmatpush1.msra.mxu0 0.0
  %1493 = vmatprep.subr.mxu0 0.0
  %1494 = vmatpush1.msra.mxu0 0.0
  %1495 = vmatprep.subr.mxu0 0.0
  %1496 = vmatpush1.msra.mxu0 0.0
  %1497 = vmatprep.subr.mxu0 0.0
  %1498 = vmatpush1.msra.mxu0 0.0
  %1499 = vmatprep.subr.mxu0 0.0
  %1500 = vmatpush1.msra.mxu0 0.0
  %1501 = vmatprep.subr.mxu0 0.0
  %1502 = vmatpush1.msra.mxu0 0.0
  %1503 = vmatprep.subr.mxu0 0.0
  %1504 = vmatpush1.msra.mxu0 0.0
  %1505 = vmatprep.subr.mxu0 0.0
  %1506 = vmatpush1.msra.mxu0 0.0
  %1507 = vmatprep.subr.mxu0 0.0
  %1508 = vmatpush1.msra.mxu0 0.0
  %1509 = vmatprep.subr.mxu0 0.0
  %1510 = vmatpush1.msra.mxu0 0.0
  %1511 = vmatprep.subr.mxu0 0.0
  %1512 = vmatpush1.msra.mxu0 0.0
  %1513 = vmatprep.subr.mxu0 0.0
  %1514 = vmatpush1.msra.mxu0 0.0
  %1515 = vmatprep.subr.mxu0 0.0
  %1516 = vmatpush1.msra.mxu0 0.0
  %1517 = vmatprep.subr.mxu0 0.0
  %1518 = vmatpush1.msra.mxu0 0.0
  %1519 = vmatprep.subr.mxu0 0.0
  %1520 = vmatpush1.msra.mxu0 0.0
  %1521 = vmatprep.subr.mxu0 0.0
  %1522 = vmatpush1.msra.mxu0 0.0
  %1523 = vmatprep.subr.mxu0 0.0
  %1524 = vmatpush1.msra.mxu0 0.0
  %1525 = vmatprep.subr.mxu0 0.0
  %1526 = vmatpush1.msra.mxu0 0.0
  %1527 = vmatprep.subr.mxu0 0.0
  %1528 = vmatpush1.msra.mxu0 0.0
  %1529 = vmatprep.subr.mxu0 0.0
  %1530 = vmatpush1.msra.mxu0 0.0
  %1531 = vmatprep.subr.mxu0 0.0
  %1532 = vmatpush1.msra.mxu0 0.0
  %1533 = vmatprep.subr.mxu0 0.0
  %1534 = vmatpush1.msra.mxu0 0.0
  %1535 = vmatprep.mubr.f32.mxu0 0.0
  %1536 = vmatmul.mubr.f32.gmra.mrb[0].mxu0 %v1280
  %v1537 = vpop.f32.mrb[0].mxu0
  %v1538 = vadd.f32 %v1276, %v1537
  %v1539 = vpop.f32.mrb[0].mxu0
  %1540 = vmatprep.mubr.f32.mxu0 0.0
  %1541 = vmatmul.mubr.f32.gmra.mrb[0].mxu0 %v1283
  %v1542 = vpop.f32.mrb[0].mxu0
  %v1543 = vadd.f32 %v1276, %v1542
  %v1544 = vpop.f32.mrb[0].mxu0
  %1545 = vmatprep.mubr.f32.mxu0 0.0
  %1546 = vmatmul.mubr.f32.gmra.mrb[0].mxu0 %v1286
  %v1547 = vpop.f32.mrb[0].mxu0
  %v1548 = vadd.f32 %v1276, %v1547
  %v1549 = vpop.f32.mrb[0].mxu0
  %1550 = vmatprep.mubr.f32.mxu0 0.0
  %1551 = vmatmul.mubr.f32.gmra.mrb[0].mxu0 %v1289
  %v1552 = vpop.f32.mrb[0].mxu0
  %v1553 = vadd.f32 %v1276, %v1552
  %v1554 = vpop.f32.mrb[0].mxu0
  %1555 = vmatprep.mubr.f32.mxu0 0.0
  %1556 = vmatmul.mubr.f32.gmra.mrb[0].mxu0 %v1292
  %v1557 = vpop.f32.mrb[0].mxu0
  %v1558 = vadd.f32 %v1276, %v1557
  %v1559 = vpop.f32.mrb[0].mxu0
  %1560 = vmatprep.mubr.f32.mxu0 0.0
  %1561 = vmatmul.mubr.f32.gmra.mrb[0].mxu0 %v1295
  %v1562 = vpop.f32.mrb[0].mxu0
  %v1563 = vadd.f32 %v1276, %v1562
  %v1564 = vpop.f32.mrb[0].mxu0
  %1565 = vmatprep.mubr.f32.mxu0 0.0
  %1566 = vmatmul.mubr.f32.gmra.mrb[0].mxu0 %v1298
  %v1567 = vpop.f32.mrb[0].mxu0
  %v1568 = vadd.f32 %v1276, %v1567
  %v1569 = vpop.f32.mrb[0].mxu0
  %1570 = vmatprep.mubr.f32.mxu0 0.0
  %1571 = vmatmul.mubr.f32.gmra.mrb[0].mxu0 %v1301
  %v1572 = vpop.f32.mrb[0].mxu0
  %v1573 = vadd.f32 %v1276, %v1572
  %v1574 = vpop.f32.mrb[0].mxu0
  %1575 = vmatprep.mubr.f32.mxu0 0.0
  %1576 = vmatmul.mubr.f32.gmra.mrb[0].mxu0 %v1304
  %v1577 = vpop.f32.mrb[0].mxu0
  %v1578 = vadd.f32 %v1276, %v1577
  %v1579 = vpop.f32.mrb[0].mxu0
  %1580 = vmatprep.mubr.f32.mxu0 0.0
  %1581 = vmatmul.mubr.f32.gmra.mrb[0].mxu0 %v1307
  %v1582 = vpop.f32.mrb[0].mxu0
  %v1583 = vadd.f32 %v1276, %v1582
  %v1584 = vpop.f32.mrb[0].mxu0
  %1585 = vmatprep.mubr.f32.mxu0 0.0
  %1586 = vmatmul.mubr.f32.gmra.mrb[0].mxu0 %v1310
  %v1587 = vpop.f32.mrb[0].mxu0
  %v1588 = vadd.f32 %v1276, %v1587
  %v1589 = vpop.f32.mrb[0].mxu0
  %1590 = vmatprep.mubr.f32.mxu0 0.0
  %1591 = vmatmul.mubr.f32.gmra.mrb[0].mxu0 %v1313
  %v1592 = vpop.f32.mrb[0].mxu0
  %v1593 = vadd.f32 %v1276, %v1592
  %v1594 = vpop.f32.mrb[0].mxu0
  %1595 = vmatprep.mubr.f32.mxu0 0.0
  %1596 = vmatmul.mubr.f32.gmra.mrb[0].mxu0 %v1316
  %v1597 = vpop.f32.mrb[0].mxu0
  %v1598 = vadd.f32 %v1276, %v1597
  %v1599 = vpop.f32.mrb[0].mxu0
  %1600 = vmatprep.mubr.f32.mxu0 0.0
  %1601 = vmatmul.mubr.f32.gmra.mrb[0].mxu0 %v1319
  %v1602 = vpop.f32.mrb[0].mxu0
  %v1603 = vadd.f32 %v1276, %v1602
  %v1604 = vpop.f32.mrb[0].mxu0
  %1605 = vmatprep.mubr.f32.mxu0 0.0
  %1606 = vmatmul.mubr.f32.gmra.mrb[0].mxu0 %v1322
  %v1607 = vpop.f32.mrb[0].mxu0
  %v1608 = vadd.f32 %v1276, %v1607
  %v1609 = vpop.f32.mrb[0].mxu0
  %1610 = vmatprep.mubr.f32.mxu0 0.0
  %1611 = vmatmul.mubr.f32.gmra.mrb[0].mxu0 %v1325
  %v1612 = vpop.f32.mrb[0].mxu0
  %v1613 = vadd.f32 %v1276, %v1612
  %v1614 = vpop.f32.mrb[0].mxu0
  %1615 = vmatprep.mubr.f32.mxu0 0.0
  %1616 = vmatmul.mubr.f32.gmra.mrb[0].mxu0 %v1328
  %v1617 = vpop.f32.mrb[0].mxu0
  %v1618 = vadd.f32 %v1276, %v1617
  %v1619 = vpop.f32.mrb[0].mxu0
  %1620 = vmatprep.mubr.f32.mxu0 0.0
  %1621 = vmatmul.mubr.f32.gmra.mrb[0].mxu0 %v1331
  %v1622 = vpop.f32.mrb[0].mxu0
  %v1623 = vadd.f32 %v1276, %v1622
  %v1624 = vpop.f32.mrb[0].mxu0
  %1625 = vmatprep.mubr.f32.mxu0 0.0
  %1626 = vmatmul.mubr.f32.gmra.mrb[0].mxu0 %v1334
  %v1627 = vpop.f32.mrb[0].mxu0
  %v1628 = vadd.f32 %v1276, %v1627
  %v1629 = vpop.f32.mrb[0].mxu0
  %1630 = vmatprep.mubr.f32.mxu0 0.0
  %1631 = vmatmul.mubr.f32.gmra.mrb[0].mxu0 %v1337
  %v1632 = vpop.f32.mrb[0].mxu0
  %v1633 = vadd.f32 %v1276, %v1632
  %v1634 = vpop.f32.mrb[0].mxu0
  %1635 = vmatprep.mubr.f32.mxu0 0.0
  %1636 = vmatmul.mubr.f32.gmra.mrb[0].mxu0 %v1340
  %v1637 = vpop.f32.mrb[0].mxu0
  %v1638 = vadd.f32 %v1276, %v1637
  %v1639 = vpop.f32.mrb[0].mxu0
  %1640 = vmatprep.mubr.f32.mxu0 0.0
  %1641 = vmatmul.mubr.f32.gmra.mrb[0].mxu0 %v1343
  %v1642 = vpop.f32.mrb[0].mxu0
  %v1643 = vadd.f32 %v1276, %v1642
  %v1644 = vpop.f32.mrb[0].mxu0
  %1645 = vmatprep.mubr.f32.mxu0 0.0
  %1646 = vmatmul.mubr.f32.gmra.mrb[0].mxu0 %v1346
  %v1647 = vpop.f32.mrb[0].mxu0
  %v1648 = vadd.f32 %v1276, %v1647
  %v1649 = vpop.f32.mrb[0].mxu0
  %1650 = vmatprep.mubr.f32.mxu0 0.0
  %1651 = vmatmul.mubr.f32.gmra.mrb[0].mxu0 %v1349
  %v1652 = vpop.f32.mrb[0].mxu0
  %v1653 = vadd.f32 %v1276, %v1652
  %v1654 = vpop.f32.mrb[0].mxu0
  %1655 = vmatprep.mubr.f32.mxu0 0.0
  %1656 = vmatmul.mubr.f32.gmra.mrb[0].mxu0 %v1352
  %v1657 = vpop.f32.mrb[0].mxu0
  %v1658 = vadd.f32 %v1276, %v1657
  %v1659 = vpop.f32.mrb[0].mxu0
  %1660 = vmatprep.mubr.f32.mxu0 0.0
  %1661 = vmatmul.mubr.f32.gmra.mrb[0].mxu0 %v1355
  %v1662 = vpop.f32.mrb[0].mxu0
  %v1663 = vadd.f32 %v1276, %v1662
  %v1664 = vpop.f32.mrb[0].mxu0
  %1665 = vmatprep.mubr.f32.mxu0 0.0
  %1666 = vmatmul.mubr.f32.gmra.mrb[0].mxu0 %v1358
  %v1667 = vpop.f32.mrb[0].mxu0
  %v1668 = vadd.f32 %v1276, %v1667
  %v1669 = vpop.f32.mrb[0].mxu0
  %1670 = vmatprep.mubr.f32.mxu0 0.0
  %1671 = vmatmul.mubr.f32.gmra.mrb[0].mxu0 %v1361
  %v1672 = vpop.f32.mrb[0].mxu0
  %v1673 = vadd.f32 %v1276, %v1672
  %v1674 = vpop.f32.mrb[0].mxu0
  %1675 = vmatprep.mubr.f32.mxu0 0.0
  %1676 = vmatmul.mubr.f32.gmra.mrb[0].mxu0 %v1364
  %v1677 = vpop.f32.mrb[0].mxu0
  %v1678 = vadd.f32 %v1276, %v1677
  %v1679 = vpop.f32.mrb[0].mxu0
  %1680 = vmatprep.mubr.f32.mxu0 0.0
  %1681 = vmatmul.mubr.f32.gmra.mrb[0].mxu0 %v1367
  %v1682 = vpop.f32.mrb[0].mxu0
  %v1683 = vadd.f32 %v1276, %v1682
  %v1684 = vpop.f32.mrb[0].mxu0
  %1685 = vmatprep.mubr.f32.mxu0 0.0
  %1686 = vmatmul.mubr.f32.gmra.mrb[0].mxu0 %v1370
  %v1687 = vpop.f32.mrb[0].mxu0
  %v1688 = vadd.f32 %v1276, %v1687
  %v1689 = vpop.f32.mrb[0].mxu0
  %1690 = vmatprep.mubr.f32.mxu0 0.0
  %1691 = vmatmul.mubr.f32.gmra.mrb[0].mxu0 %v1373
  %v1692 = vpop.f32.mrb[0].mxu0
  %v1693 = vadd.f32 %v1276, %v1692
  %v1694 = vpop.f32.mrb[0].mxu0
  %1695 = vmatprep.mubr.f32.mxu0 0.0
  %1696 = vmatmul.mubr.f32.gmra.mrb[0].mxu0 %v1376
  %v1697 = vpop.f32.mrb[0].mxu0
  %v1698 = vadd.f32 %v1276, %v1697
  %v1699 = vpop.f32.mrb[0].mxu0
  %1700 = vmatprep.mubr.f32.mxu0 0.0
  %1701 = vmatmul.mubr.f32.gmra.mrb[0].mxu0 %v1379
  %v1702 = vpop.f32.mrb[0].mxu0
  %v1703 = vadd.f32 %v1276, %v1702
  %v1704 = vpop.f32.mrb[0].mxu0
  %1705 = vmatprep.mubr.f32.mxu0 0.0
  %1706 = vmatmul.mubr.f32.gmra.mrb[0].mxu0 %v1382
  %v1707 = vpop.f32.mrb[0].mxu0
  %v1708 = vadd.f32 %v1276, %v1707
  %v1709 = vpop.f32.mrb[0].mxu0
  %1710 = vmatprep.mubr.f32.mxu0 0.0
  %1711 = vmatmul.mubr.f32.gmra.mrb[0].mxu0 %v1385
  %v1712 = vpop.f32.mrb[0].mxu0
  %v1713 = vadd.f32 %v1276, %v1712
  %v1714 = vpop.f32.mrb[0].mxu0
  %1715 = vmatprep.mubr.f32.mxu0 0.0
  %1716 = vmatmul.mubr.f32.gmra.mrb[0].mxu0 %v1388
  %v1717 = vpop.f32.mrb[0].mxu0
  %v1718 = vadd.f32 %v1276, %v1717
  %v1719 = vpop.f32.mrb[0].mxu0
  %1720 = vmatprep.mubr.f32.mxu0 0.0
  %1721 = vmatmul.mubr.f32.gmra.mrb[0].mxu0 %v1391
  %v1722 = vpop.f32.mrb[0].mxu0
  %v1723 = vadd.f32 %v1276, %v1722
  %v1724 = vpop.f32.mrb[0].mxu0
  %1725 = vmatprep.mubr.f32.mxu0 0.0
  %1726 = vmatmul.mubr.f32.gmra.mrb[0].mxu0 %v1394
  %v1727 = vpop.f32.mrb[0].mxu0
  %v1728 = vadd.f32 %v1276, %v1727
  %v1729 = vpop.f32.mrb[0].mxu0
  %1730 = vmatprep.mubr.f32.mxu0 0.0
  %1731 = vmatmul.mubr.f32.gmra.mrb[0].mxu0 %v1397
  %v1732 = vpop.f32.mrb[0].mxu0
  %v1733 = vadd.f32 %v1276, %v1732
  %v1734 = vpop.f32.mrb[0].mxu0
  %1735 = vmatprep.mubr.f32.mxu0 0.0
  %1736 = vmatmul.mubr.f32.gmra.mrb[0].mxu0 %v1400
  %v1737 = vpop.f32.mrb[0].mxu0
  %v1738 = vadd.f32 %v1276, %v1737
  %v1739 = vpop.f32.mrb[0].mxu0
  %1740 = vmatprep.mubr.f32.mxu0 0.0
  %1741 = vmatmul.mubr.f32.gmra.mrb[0].mxu0 %v1403
  %v1742 = vpop.f32.mrb[0].mxu0
  %v1743 = vadd.f32 %v1276, %v1742
  %v1744 = vpop.f32.mrb[0].mxu0
  %1745 = vmatprep.mubr.f32.mxu0 0.0
  %1746 = vmatmul.mubr.f32.gmra.mrb[0].mxu0 %v1406
  %v1747 = vpop.f32.mrb[0].mxu0
  %v1748 = vadd.f32 %v1276, %v1747
  %v1749 = vpop.f32.mrb[0].mxu0
  %1750 = vmatprep.mubr.f32.mxu0 0.0
  %1751 = vmatmul.mubr.f32.gmra.mrb[0].mxu0 %v1409
  %v1752 = vpop.f32.mrb[0].mxu0
  %v1753 = vadd.f32 %v1276, %v1752
  %v1754 = vpop.f32.mrb[0].mxu0
  %1755 = vmatprep.mubr.f32.mxu0 0.0
  %1756 = vmatmul.mubr.f32.gmra.mrb[0].mxu0 %v1412
  %v1757 = vpop.f32.mrb[0].mxu0
  %v1758 = vadd.f32 %v1276, %v1757
  %v1759 = vpop.f32.mrb[0].mxu0
  %1760 = vmatprep.mubr.f32.mxu0 0.0
  %1761 = vmatmul.mubr.f32.gmra.mrb[0].mxu0 %v1415
  %v1762 = vpop.f32.mrb[0].mxu0
  %v1763 = vadd.f32 %v1276, %v1762
  %v1764 = vpop.f32.mrb[0].mxu0
  %1765 = vmatprep.mubr.f32.mxu0 0.0
  %1766 = vmatmul.mubr.f32.gmra.mrb[0].mxu0 %v1418
  %v1767 = vpop.f32.mrb[0].mxu0
  %v1768 = vadd.f32 %v1276, %v1767
  %v1769 = vpop.f32.mrb[0].mxu0
  %1770 = vmatprep.mubr.f32.mxu0 0.0
  %1771 = vmatmul.mubr.f32.gmra.mrb[0].mxu0 %v1421
  %v1772 = vpop.f32.mrb[0].mxu0
  %v1773 = vadd.f32 %v1276, %v1772
  %v1774 = vpop.f32.mrb[0].mxu0
  %1775 = vmatprep.mubr.f32.mxu0 0.0
  %1776 = vmatmul.mubr.f32.gmra.mrb[0].mxu0 %v1424
  %v1777 = vpop.f32.mrb[0].mxu0
  %v1778 = vadd.f32 %v1276, %v1777
  %v1779 = vpop.f32.mrb[0].mxu0
  %1780 = vmatprep.mubr.f32.mxu0 0.0
  %1781 = vmatmul.mubr.f32.gmra.mrb[0].mxu0 %v1427
  %v1782 = vpop.f32.mrb[0].mxu0
  %v1783 = vadd.f32 %v1276, %v1782
  %v1784 = vpop.f32.mrb[0].mxu0
  %1785 = vmatprep.mubr.f32.mxu0 0.0
  %1786 = vmatmul.mubr.f32.gmra.mrb[0].mxu0 %v1430
  %v1787 = vpop.f32.mrb[0].mxu0
  %v1788 = vadd.f32 %v1276, %v1787
  %v1789 = vpop.f32.mrb[0].mxu0
  %1790 = vmatprep.mubr.f32.mxu0 0.0
  %1791 = vmatmul.mubr.f32.gmra.mrb[0].mxu0 %v1433
  %v1792 = vpop.f32.mrb[0].mxu0
  %v1793 = vadd.f32 %v1276, %v1792
  %v1794 = vpop.f32.mrb[0].mxu0
  %1795 = vmatprep.mubr.f32.mxu0 0.0
  %1796 = vmatmul.mubr.f32.gmra.mrb[0].mxu0 %v1436
  %v1797 = vpop.f32.mrb[0].mxu0
  %v1798 = vadd.f32 %v1276, %v1797
  %v1799 = vpop.f32.mrb[0].mxu0
  %1800 = vmatprep.mubr.f32.mxu0 0.0
  %1801 = vmatmul.mubr.f32.gmra.mrb[0].mxu0 %v1439
  %v1802 = vpop.f32.mrb[0].mxu0
  %v1803 = vadd.f32 %v1276, %v1802
  %v1804 = vpop.f32.mrb[0].mxu0
  %1805 = vmatprep.mubr.f32.mxu0 0.0
  %1806 = vmatmul.mubr.f32.gmra.mrb[0].mxu0 %v1442
  %v1807 = vpop.f32.mrb[0].mxu0
  %v1808 = vadd.f32 %v1276, %v1807
  %v1809 = vpop.f32.mrb[0].mxu0
  %1810 = vmatprep.mubr.f32.mxu0 0.0
  %1811 = vmatmul.mubr.f32.gmra.mrb[0].mxu0 %v1445
  %v1812 = vpop.f32.mrb[0].mxu0
  %v1813 = vadd.f32 %v1276, %v1812
  %v1814 = vpop.f32.mrb[0].mxu0
  %1815 = vmatprep.mubr.f32.mxu0 0.0
  %1816 = vmatmul.mubr.f32.gmra.mrb[0].mxu0 %v1448
  %v1817 = vpop.f32.mrb[0].mxu0
  %v1818 = vadd.f32 %v1276, %v1817
  %v1819 = vpop.f32.mrb[0].mxu0
  %1820 = vmatprep.mubr.f32.mxu0 0.0
  %1821 = vmatmul.mubr.f32.gmra.mrb[0].mxu0 %v1451
  %v1822 = vpop.f32.mrb[0].mxu0
  %v1823 = vadd.f32 %v1276, %v1822
  %v1824 = vpop.f32.mrb[0].mxu0
  %1825 = vmatprep.mubr.f32.mxu0 0.0
  %1826 = vmatmul.mubr.f32.gmra.mrb[0].mxu0 %v1454
  %v1827 = vpop.f32.mrb[0].mxu0
  %v1828 = vadd.f32 %v1276, %v1827
  %v1829 = vpop.f32.mrb[0].mxu0
  %1830 = vmatprep.mubr.f32.mxu0 0.0
  %1831 = vmatmul.mubr.f32.gmra.mrb[0].mxu0 %v1457
  %v1832 = vpop.f32.mrb[0].mxu0
  %v1833 = vadd.f32 %v1276, %v1832
  %v1834 = vpop.f32.mrb[0].mxu0
  %1835 = vmatprep.mubr.f32.mxu0 0.0
  %1836 = vmatmul.mubr.f32.gmra.mrb[0].mxu0 %v1460
  %v1837 = vpop.f32.mrb[0].mxu0
  %v1838 = vadd.f32 %v1276, %v1837
  %v1839 = vpop.f32.mrb[0].mxu0
  %1840 = vmatprep.mubr.f32.mxu0 0.0
  %1841 = vmatmul.mubr.f32.gmra.mrb[0].mxu0 %v1463
  %v1842 = vpop.f32.mrb[0].mxu0
  %v1843 = vadd.f32 %v1276, %v1842
  %v1844 = vpop.f32.mrb[0].mxu0
  %1845 = vmatprep.mubr.f32.mxu0 0.0
  %1846 = vmatmul.mubr.f32.gmra.mrb[0].mxu0 %v1466
  %v1847 = vpop.f32.mrb[0].mxu0
  %v1848 = vadd.f32 %v1276, %v1847
  %v1849 = vpop.f32.mrb[0].mxu0
  %1850 = vmatprep.mubr.f32.mxu0 0.0
  %1851 = vmatmul.mubr.f32.gmra.mrb[0].mxu0 %v1469
  %v1852 = vpop.f32.mrb[0].mxu0
  %v1853 = vadd.f32 %v1276, %v1852
  %v1854 = vpop.f32.mrb[0].mxu0
  %1855 = vdwg.mxu0
  %1856 = vst [vmem:[%s7] sm:$0xff] %v1538
  %1857 = vst [vmem:[%s7 + $0x8] sm:$0xff] %v1543
  %1858 = vst [vmem:[%s7 + $0x10] sm:$0xff] %v1548
  %1859 = vst [vmem:[%s7 + $0x18] sm:$0xff] %v1553
  %1860 = vst [vmem:[%s7 + $0x20] sm:$0xff] %v1558
  %1861 = vst [vmem:[%s7 + $0x28] sm:$0xff] %v1563
  %1862 = vst [vmem:[%s7 + $0x30] sm:$0xff] %v1568
  %1863 = vst [vmem:[%s7 + $0x38] sm:$0xff] %v1573
  %1864 = vst [vmem:[%s7 + $0x40] sm:$0xff] %v1578
  %1865 = vst [vmem:[%s7 + $0x48] sm:$0xff] %v1583
  %1866 = vst [vmem:[%s7 + $0x50] sm:$0xff] %v1588
  %1867 = vst [vmem:[%s7 + $0x58] sm:$0xff] %v1593
  %1868 = vst [vmem:[%s7 + $0x60] sm:$0xff] %v1598
  %1869 = vst [vmem:[%s7 + $0x68] sm:$0xff] %v1603
  %1870 = vst [vmem:[%s7 + $0x70] sm:$0xff] %v1608
  %1871 = vst [vmem:[%s7 + $0x78] sm:$0xff] %v1613
  %1872 = vst [vmem:[%s7 + $0x80] sm:$0xff] %v1618
  %1873 = vst [vmem:[%s7 + $0x88] sm:$0xff] %v1623
  %1874 = vst [vmem:[%s7 + $0x90] sm:$0xff] %v1628
  %1875 = vst [vmem:[%s7 + $0x98] sm:$0xff] %v1633
  %1876 = vst [vmem:[%s7 + $0xa0] sm:$0xff] %v1638
  %1877 = vst [vmem:[%s7 + $0xa8] sm:$0xff] %v1643
  %1878 = vst [vmem:[%s7 + $0xb0] sm:$0xff] %v1648
  %1879 = vst [vmem:[%s7 + $0xb8] sm:$0xff] %v1653
  %1880 = vst [vmem:[%s7 + $0xc0] sm:$0xff] %v1658
  %1881 = vst [vmem:[%s7 + $0xc8] sm:$0xff] %v1663
  %1882 = vst [vmem:[%s7 + $0xd0] sm:$0xff] %v1668
  %1883 = vst [vmem:[%s7 + $0xd8] sm:$0xff] %v1673
  %1884 = vst [vmem:[%s7 + $0xe0] sm:$0xff] %v1678
  %1885 = vst [vmem:[%s7 + $0xe8] sm:$0xff] %v1683
  %1886 = vst [vmem:[%s7 + $0xf0] sm:$0xff] %v1688
  %1887 = vst [vmem:[%s7 + $0xf8] sm:$0xff] %v1693
  %1888 = vst [vmem:[%s7 + $0x100] sm:$0xff] %v1698
  %1889 = vst [vmem:[%s7 + $0x108] sm:$0xff] %v1703
  %1890 = vst [vmem:[%s7 + $0x110] sm:$0xff] %v1708
  %1891 = vst [vmem:[%s7 + $0x118] sm:$0xff] %v1713
  %1892 = vst [vmem:[%s7 + $0x120] sm:$0xff] %v1718
  %1893 = vst [vmem:[%s7 + $0x128] sm:$0xff] %v1723
  %1894 = vst [vmem:[%s7 + $0x130] sm:$0xff] %v1728
  %1895 = vst [vmem:[%s7 + $0x138] sm:$0xff] %v1733
  %1896 = vst [vmem:[%s7 + $0x140] sm:$0xff] %v1738
  %1897 = vst [vmem:[%s7 + $0x148] sm:$0xff] %v1743
  %1898 = vst [vmem:[%s7 + $0x150] sm:$0xff] %v1748
  %1899 = vst [vmem:[%s7 + $0x158] sm:$0xff] %v1753
  %1900 = vst [vmem:[%s7 + $0x160] sm:$0xff] %v1758
  %1901 = vst [vmem:[%s7 + $0x168] sm:$0xff] %v1763
  %1902 = vst [vmem:[%s7 + $0x170] sm:$0xff] %v1768
  %1903 = vst [vmem:[%s7 + $0x178] sm:$0xff] %v1773
  %1904 = vst [vmem:[%s7 + $0x180] sm:$0xff] %v1778
  %1905 = vst [vmem:[%s7 + $0x188] sm:$0xff] %v1783
  %1906 = vst [vmem:[%s7 + $0x190] sm:$0xff] %v1788
  %1907 = vst [vmem:[%s7 + $0x198] sm:$0xff] %v1793
  %1908 = vst [vmem:[%s7 + $0x1a0] sm:$0xff] %v1798
  %1909 = vst [vmem:[%s7 + $0x1a8] sm:$0xff] %v1803
  %1910 = vst [vmem:[%s7 + $0x1b0] sm:$0xff] %v1808
  %1911 = vst [vmem:[%s7 + $0x1b8] sm:$0xff] %v1813
  %1912 = vst [vmem:[%s7 + $0x1c0] sm:$0xff] %v1818
  %1913 = vst [vmem:[%s7 + $0x1c8] sm:$0xff] %v1823
  %1914 = vst [vmem:[%s7 + $0x1d0] sm:$0xff] %v1828
  %1915 = vst [vmem:[%s7 + $0x1d8] sm:$0xff] %v1833
  %1916 = vst [vmem:[%s7 + $0x1e0] sm:$0xff] %v1838
  %1917 = vst [vmem:[%s7 + $0x1e8] sm:$0xff] %v1843
  %1918 = vst [vmem:[%s7 + $0x1f0] sm:$0xff] %v1848
  %1919 = vst [vmem:[%s7 + $0x1f8] sm:$0xff] %v1853
  // Predicated region
  $region30: #{base_segmentor_forward.1} parent=0 // pred_check
    _
  $region31: #{base_segmentor_forward.1} parent=0 // pred_check_branch
    %1921 = sbr.rel (0) target = $region33
  $region32: #{base_segmentor_forward.1} parent=0 // pred_region
    _
  $region33: #{base_segmentor_forward.1} parent=0 // pred_fallthru
    _
  // Predicated region
  $region34: #{base_segmentor_forward.1} parent=0 // pred_check
    _
  $region35: #{base_segmentor_forward.1} parent=0 // pred_check_branch
    %1923 = sbr.rel (0) target = $region37
  $region36: #{base_segmentor_forward.1} parent=0 // pred_region
    _
  $region37: #{base_segmentor_forward.1} parent=0 // pred_fallthru
    _

</llo_original>
